<compile_context>
chip_gen: v7x
topology: tpu7x:2x2x1
jax: 0.10.0
libtpu: 0.0.40
codegen_flags: <defaults>
</compile_context>

<pallas_src>
import numpy as np
import jax
import jax.numpy as jnp
from jax.experimental import pallas as pl
from jax.experimental.pallas import tpu as pltpu

LANE = 128            # lane width: hidden channel dims are padded to this
MAX_TILE_B = 4096     # max batch tile (multiple of 256; VMEM-safe on v7x)


def _round_up(n, m):
    return ((n + m - 1) // m) * m


def _pick_tile(batch, max_tile=MAX_TILE_B):
    """Batch tile: >=2 grid steps when possible (v7x dual TC), multiple of 256."""
    tb = _round_up(max((batch + 1) // 2, 1), 256)
    return max(256, min(tb, max_tile))


def dense_embedder_kernel(x_ref, *refs):
    """refs = (w0, b0, w1, b1, ..., w_head, b_head, out_ref).

    Hidden weights are (in_pad, 128)/(128, 128) and hidden biases (1, 128),
    all zero-padded and lane-dense.  The first weight keeps its real K = C;
    the head weight/bias keep the real output width.  x_ref is a
    (TILE_B, C) batch tile; out_ref is (TILE_B, out_dim).
    """
    out_ref = refs[-1]
    param_refs = refs[:-1]
    n_hidden = (len(param_refs) - 2) // 2

    h = x_ref[...].astype(jnp.float32)
    for l in range(n_hidden):
        w = param_refs[2 * l][...]
        b = param_refs[2 * l + 1][...]
        h = jnp.dot(h, w, preferred_element_type=jnp.float32) + b
        h = jnp.maximum(h, 0.2 * h)          # LeakyReLU(0.2), slope < 1

    w_head = param_refs[-2][...]
    b_head = param_refs[-1][...]
    out = jnp.dot(h, w_head, preferred_element_type=jnp.float32) + b_head
    out_ref[...] = out.astype(out_ref.dtype)


def init_dense_embedder_params(key, input_dim, up_dim, depth=4,
                               num_classes_list=(2,), given_dims=None):
    """Unpadded params matching the PyTorch module's shapes.

    Conv2d(dims[l], dims[l+1], 1) weight (out,in,1,1) is stored transposed as
    (in, out) so the kernel computes x @ W.  Biases are stored as (1, out).
    """
    if given_dims is not None:
        dims = list(given_dims)
    else:
        dims = list(np.linspace(input_dim, up_dim, depth).astype(int))
    layer_dims = [(int(dims[l]), int(dims[l + 1])) for l in range(len(dims) - 1)]
    layer_dims.append((int(up_dim), int(sum(num_classes_list))))   # head

    params = []
    for fan_in, fan_out in layer_dims:
        key, kw, kb = jax.random.split(key, 3)
        bound = 1.0 / np.sqrt(fan_in)
        w = jax.random.uniform(kw, (fan_in, fan_out), jnp.float32, -bound, bound)
        b = jax.random.uniform(kb, (1, fan_out), jnp.float32, -bound, bound)
        params += [w, b]
    return params


def _pad_params(params, lane=LANE):
    """Zero-pad only the *internal* dims to lane multiples.

    Layer 0 keeps its real input width (matches the unpadded x); the head
    keeps its real output width (matches the unpadded kernel output).
    """
    n_layers = len(params) // 2
    padded = []
    for l in range(n_layers):
        w, b = params[2 * l], params[2 * l + 1]
        in_dim = w.shape[0] if l == 0 else _round_up(w.shape[0], lane)
        out_dim = w.shape[1] if l == n_layers - 1 else _round_up(w.shape[1], lane)
        w_p = jnp.zeros((in_dim, out_dim), jnp.float32).at[
            :w.shape[0], :w.shape[1]].set(w.astype(jnp.float32))
        b_p = jnp.zeros((1, out_dim), jnp.float32).at[
            :, :b.shape[1]].set(b.astype(jnp.float32))
        padded += [w_p, b_p]
    return padded


def dense_embedder_forward(x, params, *, max_tile=MAX_TILE_B, lane=LANE):
    """Pallas forward.  Accepts (B, C) or (B, C, 1, 1) like the torch module."""
    if x.ndim == 4:
        assert x.shape[2] == 1 and x.shape[3] == 1, "1x1 convs require 1x1 spatial"
        x = x.reshape(x.shape[0], x.shape[1])
    B, C = x.shape
    out_dim = params[-1].shape[-1]                      # real head width

    pparams = _pad_params(params, lane)

    # Pad only the batch axis so the grid divides (cheap, channel width stays C).
    tb = _pick_tile(B, max_tile)
    b_pad = _round_up(max(B, 1), tb)
    x_f32 = x.astype(jnp.float32)
    x_p = jnp.pad(x_f32, ((0, b_pad - B), (0, 0))) if b_pad != B else x_f32

    grid = (b_pad // tb,)
    x_spec = pl.BlockSpec((tb, C), lambda i: (i, 0))
    out_spec = pl.BlockSpec((tb, out_dim), lambda i: (i, 0))
    # Weights/biases: full-array blocks with constant index_map (fetched once,
    # VMEM-resident across the grid); single buffer since they never change.
    param_specs = [
        pl.BlockSpec(p.shape, lambda i: (0, 0), pipeline_mode=pl.Buffered(1))
        for p in pparams
    ]

    out = pl.pallas_call(
        dense_embedder_kernel,
        out_shape=jax.ShapeDtypeStruct((b_pad, out_dim), jnp.float32),
        grid=grid,
        in_specs=[x_spec] + param_specs,
        out_specs=out_spec,
        compiler_params=pltpu.CompilerParams(
            # Batch axis is independent -> megacore sharding on v7x.
            # (pltpu.CORE_PARALLEL is an option when targeting v7x only.)
            dimension_semantics=("parallel",),
            vmem_limit_bytes=32 * 1024 * 1024,
        ),
    )(x_p, *pparams)

    # Padded batch rows carry bias/LeakyReLU garbage -> slice them off.
    if b_pad != B:
        out = out[:B]
    return out.astype(x.dtype)


def dense_embedder_reference(x, params):
    """Pure-JAX reference (unpadded) for correctness check."""
    if x.ndim == 4:
        x = x.reshape(x.shape[0], x.shape[1])
    h = x.astype(jnp.float32)
    n_hidden = (len(params) - 2) // 2
    for l in range(n_hidden):
        h = h @ params[2 * l] + params[2 * l + 1]
        h = jnp.where(h >= 0, h, 0.2 * h)
    return h @ params[-2] + params[-1]


if __name__ == "__main__":
    # Config consistent with DenseEmbedder(input_dim=16, up_dim=32, depth=4,
    # num_classes_list=[2], norm=None): dims = [16, 21, 26, 32], head 32 -> 2.
    input_dim, up_dim, depth = 16, 32, 4
    num_classes_list = (2,)
    batch = 2

    key = jax.random.PRNGKey(0)
    key, kx = jax.random.split(key)
    x = jax.random.normal(kx, (batch, input_dim), jnp.float32)

    params = init_dense_embedder_params(
        key, input_dim, up_dim, depth=depth, num_classes_list=num_classes_list)

    # Small 2-D input (single grid step).
    out = dense_embedder_forward(x, params)
    out = jax.block_until_ready(out)
    ref = dense_embedder_reference(x, params)
    np.testing.assert_allclose(np.asarray(out), np.asarray(ref),
                               rtol=1e-5, atol=1e-5)
    assert out.shape == (batch, sum(num_classes_list))

    # NCHW 1x1 input with a ragged batch (exercises multi-tile grid + batch pad).
    key, kx2 = jax.random.split(key)
    x4 = jax.random.normal(kx2, (300, input_dim, 1, 1), jnp.float32)
    out4 = jax.block_until_ready(dense_embedder_forward(x4, params))
    ref4 = dense_embedder_reference(x4, params)
    np.testing.assert_allclose(np.asarray(out4), np.asarray(ref4),
                               rtol=1e-5, atol=1e-5)
    assert out4.shape == (300, sum(num_classes_list))

    # TODO(synk): norm='batch'/'instance'/'layer' variants of the module are
    # not implemented (spec instantiates norm=None -> nn.Identity).
    print("KERNEL_OK")
</pallas_src>

<mosaic_0001>
module attributes {stable_mosaic.version = 11 : i64} {
  func.func @dense_embedder_kernel(%arg0: i32, %arg1: memref<256x16xf32, #tpu.memory_space<vmem>>, %arg2: memref<16x128xf32, #tpu.memory_space<vmem>>, %arg3: memref<1x128xf32, #tpu.memory_space<vmem>>, %arg4: memref<128x128xf32, #tpu.memory_space<vmem>>, %arg5: memref<1x128xf32, #tpu.memory_space<vmem>>, %arg6: memref<128x128xf32, #tpu.memory_space<vmem>>, %arg7: memref<1x128xf32, #tpu.memory_space<vmem>>, %arg8: memref<128x2xf32, #tpu.memory_space<vmem>>, %arg9: memref<1x2xf32, #tpu.memory_space<vmem>>, %arg10: memref<256x2xf32, #tpu.memory_space<vmem>>) attributes {dimension_semantics = [#tpu.dimension_semantics<parallel>], iteration_bounds = array<i64: 1>, scalar_prefetch = 0 : i64, scratch_operands = 0 : i64, tpu.core_type = #tpu.core_type<tc>, window_params = [{transform_indices = @transform_0, window_bounds = array<i64: 256, 16>}, {pipeline_mode = #tpu.pipeline_mode<synchronous>, transform_indices = @transform_1, window_bounds = array<i64: 16, 128>}, {pipeline_mode = #tpu.pipeline_mode<synchronous>, transform_indices = @transform_2, window_bounds = array<i64: 1, 128>}, {pipeline_mode = #tpu.pipeline_mode<synchronous>, transform_indices = @transform_3, window_bounds = array<i64: 128, 128>}, {pipeline_mode = #tpu.pipeline_mode<synchronous>, transform_indices = @transform_4, window_bounds = array<i64: 1, 128>}, {pipeline_mode = #tpu.pipeline_mode<synchronous>, transform_indices = @transform_5, window_bounds = array<i64: 128, 128>}, {pipeline_mode = #tpu.pipeline_mode<synchronous>, transform_indices = @transform_6, window_bounds = array<i64: 1, 128>}, {pipeline_mode = #tpu.pipeline_mode<synchronous>, transform_indices = @transform_7, window_bounds = array<i64: 128, 2>}, {pipeline_mode = #tpu.pipeline_mode<synchronous>, transform_indices = @transform_8, window_bounds = array<i64: 1, 2>}, {transform_indices = @transform_9, window_bounds = array<i64: 256, 2>}]} {
    %c0 = arith.constant 0 : index
    %c0_0 = arith.constant 0 : index
    %0 = vector.load %arg1[%c0, %c0_0] : memref<256x16xf32, #tpu.memory_space<vmem>>, vector<256x16xf32>
    %c0_1 = arith.constant 0 : index
    %c0_2 = arith.constant 0 : index
    %1 = vector.load %arg2[%c0_1, %c0_2] : memref<16x128xf32, #tpu.memory_space<vmem>>, vector<16x128xf32>
    %c0_3 = arith.constant 0 : index
    %c0_4 = arith.constant 0 : index
    %2 = vector.load %arg3[%c0_3, %c0_4] : memref<1x128xf32, #tpu.memory_space<vmem>>, vector<1x128xf32>
    %cst = arith.constant dense<0.000000e+00> : vector<256x128xf32>
    %3 = tpu.matmul %0, %1, %cst {dimension_numbers = #tpu.dot_dimension_numbers<[1], [0], [0], [1], [0, 0, 1, 1], [], []>} : vector<256x16xf32>, vector<16x128xf32>, vector<256x128xf32> -> vector<256x128xf32>
    %4 = vector.broadcast %2 : vector<1x128xf32> to vector<256x128xf32>
    %5 = arith.addf %3, %4 : vector<256x128xf32>
    %cst_5 = arith.constant 2.000000e-01 : f32
    %6 = vector.broadcast %cst_5 : f32 to vector<256x128xf32>
    %7 = arith.mulf %6, %5 : vector<256x128xf32>
    %8 = arith.maximumf %5, %7 : vector<256x128xf32>
    %c0_6 = arith.constant 0 : index
    %c0_7 = arith.constant 0 : index
    %9 = vector.load %arg4[%c0_6, %c0_7] : memref<128x128xf32, #tpu.memory_space<vmem>>, vector<128x128xf32>
    %c0_8 = arith.constant 0 : index
    %c0_9 = arith.constant 0 : index
    %10 = vector.load %arg5[%c0_8, %c0_9] : memref<1x128xf32, #tpu.memory_space<vmem>>, vector<1x128xf32>
    %cst_10 = arith.constant dense<0.000000e+00> : vector<256x128xf32>
    %11 = tpu.matmul %8, %9, %cst_10 {dimension_numbers = #tpu.dot_dimension_numbers<[1], [0], [0], [1], [0, 0, 1, 1], [], []>} : vector<256x128xf32>, vector<128x128xf32>, vector<256x128xf32> -> vector<256x128xf32>
    %12 = vector.broadcast %10 : vector<1x128xf32> to vector<256x128xf32>
    %13 = arith.addf %11, %12 : vector<256x128xf32>
    %cst_11 = arith.constant 2.000000e-01 : f32
    %14 = vector.broadcast %cst_11 : f32 to vector<256x128xf32>
    %15 = arith.mulf %14, %13 : vector<256x128xf32>
    %16 = arith.maximumf %13, %15 : vector<256x128xf32>
    %c0_12 = arith.constant 0 : index
    %c0_13 = arith.constant 0 : index
    %17 = vector.load %arg6[%c0_12, %c0_13] : memref<128x128xf32, #tpu.memory_space<vmem>>, vector<128x128xf32>
    %c0_14 = arith.constant 0 : index
    %c0_15 = arith.constant 0 : index
    %18 = vector.load %arg7[%c0_14, %c0_15] : memref<1x128xf32, #tpu.memory_space<vmem>>, vector<1x128xf32>
    %cst_16 = arith.constant dense<0.000000e+00> : vector<256x128xf32>
    %19 = tpu.matmul %16, %17, %cst_16 {dimension_numbers = #tpu.dot_dimension_numbers<[1], [0], [0], [1], [0, 0, 1, 1], [], []>} : vector<256x128xf32>, vector<128x128xf32>, vector<256x128xf32> -> vector<256x128xf32>
    %20 = vector.broadcast %18 : vector<1x128xf32> to vector<256x128xf32>
    %21 = arith.addf %19, %20 : vector<256x128xf32>
    %cst_17 = arith.constant 2.000000e-01 : f32
    %22 = vector.broadcast %cst_17 : f32 to vector<256x128xf32>
    %23 = arith.mulf %22, %21 : vector<256x128xf32>
    %24 = arith.maximumf %21, %23 : vector<256x128xf32>
    %c0_18 = arith.constant 0 : index
    %c0_19 = arith.constant 0 : index
    %25 = vector.load %arg8[%c0_18, %c0_19] : memref<128x2xf32, #tpu.memory_space<vmem>>, vector<128x2xf32>
    %c0_20 = arith.constant 0 : index
    %c0_21 = arith.constant 0 : index
    %26 = vector.load %arg9[%c0_20, %c0_21] : memref<1x2xf32, #tpu.memory_space<vmem>>, vector<1x2xf32>
    %cst_22 = arith.constant dense<0.000000e+00> : vector<256x2xf32>
    %27 = tpu.matmul %24, %25, %cst_22 {dimension_numbers = #tpu.dot_dimension_numbers<[1], [0], [0], [1], [0, 0, 1, 1], [], []>} : vector<256x128xf32>, vector<128x2xf32>, vector<256x2xf32> -> vector<256x2xf32>
    %28 = vector.broadcast %26 : vector<1x2xf32> to vector<256x2xf32>
    %29 = arith.addf %27, %28 : vector<256x2xf32>
    %c0_23 = arith.constant 0 : index
    %c0_24 = arith.constant 0 : index
    %30 = vector.load %arg10[%c0_23, %c0_24] : memref<256x2xf32, #tpu.memory_space<vmem>>, vector<256x2xf32>
    tpu.vector_store %arg10[%c0_23, %c0_24], %29 {strides = array<i32>} : memref<256x2xf32, #tpu.memory_space<vmem>>, vector<256x2xf32>,
    return
  }
  func.func @transform_0(%arg0: i32) -> (i32, i32) {
    %c0_i32 = arith.constant 0 : i32
    %c0_i32_0 = arith.constant 0 : i32
    return %arg0, %c0_i32 : i32, i32
  }
  func.func @transform_1(%arg0: i32) -> (i32, i32) {
    %c0_i32 = arith.constant 0 : i32
    %c0_i32_0 = arith.constant 0 : i32
    %c0_i32_1 = arith.constant 0 : i32
    return %c0_i32, %c0_i32_0 : i32, i32
  }
  func.func @transform_2(%arg0: i32) -> (i32, i32) {
    %c0_i32 = arith.constant 0 : i32
    %c0_i32_0 = arith.constant 0 : i32
    %c0_i32_1 = arith.constant 0 : i32
    return %c0_i32, %c0_i32_0 : i32, i32
  }
  func.func @transform_3(%arg0: i32) -> (i32, i32) {
    %c0_i32 = arith.constant 0 : i32
    %c0_i32_0 = arith.constant 0 : i32
    %c0_i32_1 = arith.constant 0 : i32
    return %c0_i32, %c0_i32_0 : i32, i32
  }
  func.func @transform_4(%arg0: i32) -> (i32, i32) {
    %c0_i32 = arith.constant 0 : i32
    %c0_i32_0 = arith.constant 0 : i32
    %c0_i32_1 = arith.constant 0 : i32
    return %c0_i32, %c0_i32_0 : i32, i32
  }
  func.func @transform_5(%arg0: i32) -> (i32, i32) {
    %c0_i32 = arith.constant 0 : i32
    %c0_i32_0 = arith.constant 0 : i32
    %c0_i32_1 = arith.constant 0 : i32
    return %c0_i32, %c0_i32_0 : i32, i32
  }
  func.func @transform_6(%arg0: i32) -> (i32, i32) {
    %c0_i32 = arith.constant 0 : i32
    %c0_i32_0 = arith.constant 0 : i32
    %c0_i32_1 = arith.constant 0 : i32
    return %c0_i32, %c0_i32_0 : i32, i32
  }
  func.func @transform_7(%arg0: i32) -> (i32, i32) {
    %c0_i32 = arith.constant 0 : i32
    %c0_i32_0 = arith.constant 0 : i32
    %c0_i32_1 = arith.constant 0 : i32
    return %c0_i32, %c0_i32_0 : i32, i32
  }
  func.func @transform_8(%arg0: i32) -> (i32, i32) {
    %c0_i32 = arith.constant 0 : i32
    %c0_i32_0 = arith.constant 0 : i32
    %c0_i32_1 = arith.constant 0 : i32
    return %c0_i32, %c0_i32_0 : i32, i32
  }
  func.func @transform_9(%arg0: i32) -> (i32, i32) {
    %c0_i32 = arith.constant 0 : i32
    %c0_i32_0 = arith.constant 0 : i32
    return %arg0, %c0_i32 : i32, i32
  }
}

</mosaic_0001>

<llo_original>
// kernel: tpu_custom_call.1
$region0: #{tpu_custom_call.1}
  #allocation0 [shape = 'u32[]', space=smem, size = 0x4, offset = 0x4, fixed_abs, tag = 'smem constant byte address 0x4 - core index']
  #allocation1 [shape = 'u32[144,128]{1,0:T(1,128)}', space=vmem, size = 0x12000, scoped, tag = 'internal scratch']
  %s0 = inlined_call_operand.vmem [shape: f32[256,16], index: 0, kind: input, shape index: {}]
  %s1 = inlined_call_operand.vmem [shape: f32[16,128], index: 1, kind: input, shape index: {}]
  %s2 = inlined_call_operand.vmem [shape: f32[1,128], index: 2, kind: input, shape index: {}]
  %s3 = inlined_call_operand.vmem [shape: f32[128,128], index: 3, kind: input, shape index: {}]
  %s4 = inlined_call_operand.vmem [shape: f32[1,128], index: 4, kind: input, shape index: {}]
  %s5 = inlined_call_operand.vmem [shape: f32[128,128], index: 5, kind: input, shape index: {}]
  %s6 = inlined_call_operand.vmem [shape: f32[1,128], index: 6, kind: input, shape index: {}]
  %s7 = inlined_call_operand.vmem [shape: f32[128,2], index: 7, kind: input, shape index: {}]
  %s8 = inlined_call_operand.vmem [shape: f32[1,2], index: 8, kind: input, shape index: {}]
  %s9 = inlined_call_operand.vmem [shape: f32[256,2], index: 9, kind: output, shape index: {}]
  %s10 = sld [smem:[#allocation0]]
  $region46: #{tpu_custom_call.1} parent=0
    _
  %s12 = ssub.s32 1, %s10
  %s13 = scalar_select 0, %s12, %s10
  // Predicated region
  $region2: #{tpu_custom_call.1} parent=0 // pred_check
    _
  $region3: #{tpu_custom_call.1} parent=0 // pred_check_branch
    %15 = sbr.rel (0) target = $region5
  $region4: #{tpu_custom_call.1} parent=0 // pred_region
    _
  $region5: #{tpu_custom_call.1} parent=0 // pred_fallthru
    _
  // Predicated region
  $region6: #{tpu_custom_call.1} parent=0 // pred_check
    _
  $region7: #{tpu_custom_call.1} parent=0 // pred_check_branch
    %17 = sbr.rel (0) target = $region9
  $region8: #{tpu_custom_call.1} parent=0 // pred_region
    _
  $region9: #{tpu_custom_call.1} parent=0 // pred_fallthru
    _
  // Predicated region
  $region10: #{tpu_custom_call.1} parent=0 // pred_check
    _
  $region11: #{tpu_custom_call.1} parent=0 // pred_check_branch
    %19 = sbr.rel (0) target = $region13
  $region12: #{tpu_custom_call.1} parent=0 // pred_region
    _
  $region13: #{tpu_custom_call.1} parent=0 // pred_fallthru
    _
  // Predicated region
  $region14: #{tpu_custom_call.1} parent=0 // pred_check
    _
  $region15: #{tpu_custom_call.1} parent=0 // pred_check_branch
    %21 = sbr.rel (0) target = $region17
  $region16: #{tpu_custom_call.1} parent=0 // pred_region
    _
  $region17: #{tpu_custom_call.1} parent=0 // pred_fallthru
    _
  // Predicated region
  $region18: #{tpu_custom_call.1} parent=0 // pred_check
    _
  $region19: #{tpu_custom_call.1} parent=0 // pred_check_branch
    %23 = sbr.rel (0) target = $region21
  $region20: #{tpu_custom_call.1} parent=0 // pred_region
    _
  $region21: #{tpu_custom_call.1} parent=0 // pred_fallthru
    _
  // Predicated region
  $region22: #{tpu_custom_call.1} parent=0 // pred_check
    _
  $region23: #{tpu_custom_call.1} parent=0 // pred_check_branch
    %25 = sbr.rel (0) target = $region25
  $region24: #{tpu_custom_call.1} parent=0 // pred_region
    _
  $region25: #{tpu_custom_call.1} parent=0 // pred_fallthru
    _
  // Predicated region
  $region26: #{tpu_custom_call.1} parent=0 // pred_check
    _
  $region27: #{tpu_custom_call.1} parent=0 // pred_check_branch
    %27 = sbr.rel (0) target = $region29
  $region28: #{tpu_custom_call.1} parent=0 // pred_region
    _
  $region29: #{tpu_custom_call.1} parent=0 // pred_fallthru
    _
  // Predicated region
  $region30: #{tpu_custom_call.1} parent=0 // pred_check
    _
  $region31: #{tpu_custom_call.1} parent=0 // pred_check_branch
    %29 = sbr.rel (0) target = $region33
  $region32: #{tpu_custom_call.1} parent=0 // pred_region
    _
  $region33: #{tpu_custom_call.1} parent=0 // pred_fallthru
    _
  // Predicated region
  $region34: #{tpu_custom_call.1} parent=0 // pred_check
    _
  $region35: #{tpu_custom_call.1} parent=0 // pred_check_branch
    %31 = sbr.rel (0) target = $region37
  $region36: #{tpu_custom_call.1} parent=0 // pred_region
    _
  $region37: #{tpu_custom_call.1} parent=0 // pred_fallthru
    _
  %v32 = vld [vmem:[%s0] sm:$0xff]
  %v33 = vld [vmem:[%s0 + $0x8] sm:$0xff]
  %v34 = vld [vmem:[%s0 + $0x10] sm:$0xff]
  %v35 = vld [vmem:[%s0 + $0x18] sm:$0xff]
  %v36 = vld [vmem:[%s0 + $0x20] sm:$0xff]
  %v37 = vld [vmem:[%s0 + $0x28] sm:$0xff]
  %v38 = vld [vmem:[%s0 + $0x30] sm:$0xff]
  %v39 = vld [vmem:[%s0 + $0x38] sm:$0xff]
  %v40 = vld [vmem:[%s0 + $0x40] sm:$0xff]
  %v41 = vld [vmem:[%s0 + $0x48] sm:$0xff]
  %v42 = vld [vmem:[%s0 + $0x50] sm:$0xff]
  %v43 = vld [vmem:[%s0 + $0x58] sm:$0xff]
  %v44 = vld [vmem:[%s0 + $0x60] sm:$0xff]
  %v45 = vld [vmem:[%s0 + $0x68] sm:$0xff]
  %v46 = vld [vmem:[%s0 + $0x70] sm:$0xff]
  %v47 = vld [vmem:[%s0 + $0x78] sm:$0xff]
  %v48 = vld [vmem:[%s0 + $0x80] sm:$0xff]
  %v49 = vld [vmem:[%s0 + $0x88] sm:$0xff]
  %v50 = vld [vmem:[%s0 + $0x90] sm:$0xff]
  %v51 = vld [vmem:[%s0 + $0x98] sm:$0xff]
  %v52 = vld [vmem:[%s0 + $0xa0] sm:$0xff]
  %v53 = vld [vmem:[%s0 + $0xa8] sm:$0xff]
  %v54 = vld [vmem:[%s0 + $0xb0] sm:$0xff]
  %v55 = vld [vmem:[%s0 + $0xb8] sm:$0xff]
  %v56 = vld [vmem:[%s0 + $0xc0] sm:$0xff]
  %v57 = vld [vmem:[%s0 + $0xc8] sm:$0xff]
  %v58 = vld [vmem:[%s0 + $0xd0] sm:$0xff]
  %v59 = vld [vmem:[%s0 + $0xd8] sm:$0xff]
  %v60 = vld [vmem:[%s0 + $0xe0] sm:$0xff]
  %v61 = vld [vmem:[%s0 + $0xe8] sm:$0xff]
  %v62 = vld [vmem:[%s0 + $0xf0] sm:$0xff]
  %v63 = vld [vmem:[%s0 + $0xf8] sm:$0xff]
  %v64 = vld [vmem:[%s1] sm:$0xff]
  %v65 = vld [vmem:[%s1 + $0x8] sm:$0xff]
  %v66 = vld [vmem:[%s2] sm:$0x1]
  %v68 = vlaneseq
  %v69 = vshrl.u32 %v68, 7
  %v70 = vsub.s32 0, %v69
  %v71 = vrot.slane %v66, %v70
  %vm73 = vcmask 130048
  %v75 = vsel %vm73, %v32, 0
  %v78 = vsel %vm73, %v33, 0
  %v81 = vsel %vm73, %v34, 0
  %v84 = vsel %vm73, %v35, 0
  %v87 = vsel %vm73, %v36, 0
  %v90 = vsel %vm73, %v37, 0
  %v93 = vsel %vm73, %v38, 0
  %v96 = vsel %vm73, %v39, 0
  %v99 = vsel %vm73, %v40, 0
  %v102 = vsel %vm73, %v41, 0
  %v105 = vsel %vm73, %v42, 0
  %v108 = vsel %vm73, %v43, 0
  %v111 = vsel %vm73, %v44, 0
  %v114 = vsel %vm73, %v45, 0
  %v117 = vsel %vm73, %v46, 0
  %v120 = vsel %vm73, %v47, 0
  %v123 = vsel %vm73, %v48, 0
  %v126 = vsel %vm73, %v49, 0
  %v129 = vsel %vm73, %v50, 0
  %v132 = vsel %vm73, %v51, 0
  %v135 = vsel %vm73, %v52, 0
  %v138 = vsel %vm73, %v53, 0
  %v141 = vsel %vm73, %v54, 0
  %v144 = vsel %vm73, %v55, 0
  %v147 = vsel %vm73, %v56, 0
  %v150 = vsel %vm73, %v57, 0
  %v153 = vsel %vm73, %v58, 0
  %v156 = vsel %vm73, %v59, 0
  %v159 = vsel %vm73, %v60, 0
  %v162 = vsel %vm73, %v61, 0
  %v165 = vsel %vm73, %v62, 0
  %v168 = vsel %vm73, %v63, 0
  %170 = vmatprep.subr.mxu0 0.0
  %171 = vmatpush1.msra.mxu0 %v64
  %172 = vmatprep.subr.mxu0 0.0
  %173 = vmatpush1.msra.mxu0 %v65
  %174 = vmatprep.subr.mxu0 0.0
  %175 = vmatpush1.msra.mxu0 0.0
  %176 = vmatprep.subr.mxu0 0.0
  %177 = vmatpush1.msra.mxu0 0.0
  %178 = vmatprep.subr.mxu0 0.0
  %179 = vmatpush1.msra.mxu0 0.0
  %180 = vmatprep.subr.mxu0 0.0
  %181 = vmatpush1.msra.mxu0 0.0
  %182 = vmatprep.subr.mxu0 0.0
  %183 = vmatpush1.msra.mxu0 0.0
  %184 = vmatprep.subr.mxu0 0.0
  %185 = vmatpush1.msra.mxu0 0.0
  %186 = vmatprep.subr.mxu0 0.0
  %187 = vmatpush1.msra.mxu0 0.0
  %188 = vmatprep.subr.mxu0 0.0
  %189 = vmatpush1.msra.mxu0 0.0
  %190 = vmatprep.subr.mxu0 0.0
  %191 = vmatpush1.msra.mxu0 0.0
  %192 = vmatprep.subr.mxu0 0.0
  %193 = vmatpush1.msra.mxu0 0.0
  %194 = vmatprep.subr.mxu0 0.0
  %195 = vmatpush1.msra.mxu0 0.0
  %196 = vmatprep.subr.mxu0 0.0
  %197 = vmatpush1.msra.mxu0 0.0
  %198 = vmatprep.subr.mxu0 0.0
  %199 = vmatpush1.msra.mxu0 0.0
  %200 = vmatprep.subr.mxu0 0.0
  %201 = vmatpush1.msra.mxu0 0.0
  %202 = vmatprep.subr.mxu0 0.0
  %203 = vmatpush1.msra.mxu0 0.0
  %204 = vmatprep.subr.mxu0 0.0
  %205 = vmatpush1.msra.mxu0 0.0
  %206 = vmatprep.subr.mxu0 0.0
  %207 = vmatpush1.msra.mxu0 0.0
  %208 = vmatprep.subr.mxu0 0.0
  %209 = vmatpush1.msra.mxu0 0.0
  %210 = vmatprep.subr.mxu0 0.0
  %211 = vmatpush1.msra.mxu0 0.0
  %212 = vmatprep.subr.mxu0 0.0
  %213 = vmatpush1.msra.mxu0 0.0
  %214 = vmatprep.subr.mxu0 0.0
  %215 = vmatpush1.msra.mxu0 0.0
  %216 = vmatprep.subr.mxu0 0.0
  %217 = vmatpush1.msra.mxu0 0.0
  %218 = vmatprep.subr.mxu0 0.0
  %219 = vmatpush1.msra.mxu0 0.0
  %220 = vmatprep.subr.mxu0 0.0
  %221 = vmatpush1.msra.mxu0 0.0
  %222 = vmatprep.subr.mxu0 0.0
  %223 = vmatpush1.msra.mxu0 0.0
  %224 = vmatprep.subr.mxu0 0.0
  %225 = vmatpush1.msra.mxu0 0.0
  %226 = vmatprep.subr.mxu0 0.0
  %227 = vmatpush1.msra.mxu0 0.0
  %228 = vmatprep.subr.mxu0 0.0
  %229 = vmatpush1.msra.mxu0 0.0
  %230 = vmatprep.subr.mxu0 0.0
  %231 = vmatpush1.msra.mxu0 0.0
  %232 = vmatprep.subr.mxu0 0.0
  %233 = vmatpush1.msra.mxu0 0.0
  %234 = vmatprep.mubr.f32.mxu0 0.0
  %235 = vmatmul.mubr.f32.gmra.mrb[0].mxu0 %v75
  %v236 = vpop.f32.mrb[0].mxu0
  %v237 = vadd.f32 %v71, %v236
  %v238 = vpop.f32.mrb[0].mxu0
  %239 = vmatprep.mubr.f32.mxu0 0.0
  %240 = vmatmul.mubr.f32.gmra.mrb[0].mxu0 %v78
  %v241 = vpop.f32.mrb[0].mxu0
  %v242 = vadd.f32 %v71, %v241
  %v243 = vpop.f32.mrb[0].mxu0
  %244 = vmatprep.mubr.f32.mxu0 0.0
  %245 = vmatmul.mubr.f32.gmra.mrb[0].mxu0 %v81
  %v246 = vpop.f32.mrb[0].mxu0
  %v247 = vadd.f32 %v71, %v246
  %v248 = vpop.f32.mrb[0].mxu0
  %249 = vmatprep.mubr.f32.mxu0 0.0
  %250 = vmatmul.mubr.f32.gmra.mrb[0].mxu0 %v84
  %v251 = vpop.f32.mrb[0].mxu0
  %v252 = vadd.f32 %v71, %v251
  %v253 = vpop.f32.mrb[0].mxu0
  %254 = vmatprep.mubr.f32.mxu0 0.0
  %255 = vmatmul.mubr.f32.gmra.mrb[0].mxu0 %v87
  %v256 = vpop.f32.mrb[0].mxu0
  %v257 = vadd.f32 %v71, %v256
  %v258 = vpop.f32.mrb[0].mxu0
  %259 = vmatprep.mubr.f32.mxu0 0.0
  %260 = vmatmul.mubr.f32.gmra.mrb[0].mxu0 %v90
  %v261 = vpop.f32.mrb[0].mxu0
  %v262 = vadd.f32 %v71, %v261
  %v263 = vpop.f32.mrb[0].mxu0
  %264 = vmatprep.mubr.f32.mxu0 0.0
  %265 = vmatmul.mubr.f32.gmra.mrb[0].mxu0 %v93
  %v266 = vpop.f32.mrb[0].mxu0
  %v267 = vadd.f32 %v71, %v266
  %v268 = vpop.f32.mrb[0].mxu0
  %269 = vmatprep.mubr.f32.mxu0 0.0
  %270 = vmatmul.mubr.f32.gmra.mrb[0].mxu0 %v96
  %v271 = vpop.f32.mrb[0].mxu0
  %v272 = vadd.f32 %v71, %v271
  %v273 = vpop.f32.mrb[0].mxu0
  %274 = vmatprep.mubr.f32.mxu0 0.0
  %275 = vmatmul.mubr.f32.gmra.mrb[0].mxu0 %v99
  %v276 = vpop.f32.mrb[0].mxu0
  %v277 = vadd.f32 %v71, %v276
  %v278 = vpop.f32.mrb[0].mxu0
  %279 = vmatprep.mubr.f32.mxu0 0.0
  %280 = vmatmul.mubr.f32.gmra.mrb[0].mxu0 %v102
  %v281 = vpop.f32.mrb[0].mxu0
  %v282 = vadd.f32 %v71, %v281
  %v283 = vpop.f32.mrb[0].mxu0
  %284 = vmatprep.mubr.f32.mxu0 0.0
  %285 = vmatmul.mubr.f32.gmra.mrb[0].mxu0 %v105
  %v286 = vpop.f32.mrb[0].mxu0
  %v287 = vadd.f32 %v71, %v286
  %v288 = vpop.f32.mrb[0].mxu0
  %289 = vmatprep.mubr.f32.mxu0 0.0
  %290 = vmatmul.mubr.f32.gmra.mrb[0].mxu0 %v108
  %v291 = vpop.f32.mrb[0].mxu0
  %v292 = vadd.f32 %v71, %v291
  %v293 = vpop.f32.mrb[0].mxu0
  %294 = vmatprep.mubr.f32.mxu0 0.0
  %295 = vmatmul.mubr.f32.gmra.mrb[0].mxu0 %v111
  %v296 = vpop.f32.mrb[0].mxu0
  %v297 = vadd.f32 %v71, %v296
  %v298 = vpop.f32.mrb[0].mxu0
  %299 = vmatprep.mubr.f32.mxu0 0.0
  %300 = vmatmul.mubr.f32.gmra.mrb[0].mxu0 %v114
  %v301 = vpop.f32.mrb[0].mxu0
  %v302 = vadd.f32 %v71, %v301
  %v303 = vpop.f32.mrb[0].mxu0
  %304 = vmatprep.mubr.f32.mxu0 0.0
  %305 = vmatmul.mubr.f32.gmra.mrb[0].mxu0 %v117
  %v306 = vpop.f32.mrb[0].mxu0
  %v307 = vadd.f32 %v71, %v306
  %v308 = vpop.f32.mrb[0].mxu0
  %309 = vmatprep.mubr.f32.mxu0 0.0
  %310 = vmatmul.mubr.f32.gmra.mrb[0].mxu0 %v120
  %v311 = vpop.f32.mrb[0].mxu0
  %v312 = vadd.f32 %v71, %v311
  %v313 = vpop.f32.mrb[0].mxu0
  %314 = vmatprep.mubr.f32.mxu0 0.0
  %315 = vmatmul.mubr.f32.gmra.mrb[0].mxu0 %v123
  %v316 = vpop.f32.mrb[0].mxu0
  %v317 = vadd.f32 %v71, %v316
  %v318 = vpop.f32.mrb[0].mxu0
  %319 = vmatprep.mubr.f32.mxu0 0.0
  %320 = vmatmul.mubr.f32.gmra.mrb[0].mxu0 %v126
  %v321 = vpop.f32.mrb[0].mxu0
  %v322 = vadd.f32 %v71, %v321
  %v323 = vpop.f32.mrb[0].mxu0
  %324 = vmatprep.mubr.f32.mxu0 0.0
  %325 = vmatmul.mubr.f32.gmra.mrb[0].mxu0 %v129
  %v326 = vpop.f32.mrb[0].mxu0
  %v327 = vadd.f32 %v71, %v326
  %v328 = vpop.f32.mrb[0].mxu0
  %329 = vmatprep.mubr.f32.mxu0 0.0
  %330 = vmatmul.mubr.f32.gmra.mrb[0].mxu0 %v132
  %v331 = vpop.f32.mrb[0].mxu0
  %v332 = vadd.f32 %v71, %v331
  %v333 = vpop.f32.mrb[0].mxu0
  %334 = vmatprep.mubr.f32.mxu0 0.0
  %335 = vmatmul.mubr.f32.gmra.mrb[0].mxu0 %v135
  %v336 = vpop.f32.mrb[0].mxu0
  %v337 = vadd.f32 %v71, %v336
  %v338 = vpop.f32.mrb[0].mxu0
  %339 = vmatprep.mubr.f32.mxu0 0.0
  %340 = vmatmul.mubr.f32.gmra.mrb[0].mxu0 %v138
  %v341 = vpop.f32.mrb[0].mxu0
  %v342 = vadd.f32 %v71, %v341
  %v343 = vpop.f32.mrb[0].mxu0
  %344 = vmatprep.mubr.f32.mxu0 0.0
  %345 = vmatmul.mubr.f32.gmra.mrb[0].mxu0 %v141
  %v346 = vpop.f32.mrb[0].mxu0
  %v347 = vadd.f32 %v71, %v346
  %v348 = vpop.f32.mrb[0].mxu0
  %349 = vmatprep.mubr.f32.mxu0 0.0
  %350 = vmatmul.mubr.f32.gmra.mrb[0].mxu0 %v144
  %v351 = vpop.f32.mrb[0].mxu0
  %v352 = vadd.f32 %v71, %v351
  %v353 = vpop.f32.mrb[0].mxu0
  %354 = vmatprep.mubr.f32.mxu0 0.0
  %355 = vmatmul.mubr.f32.gmra.mrb[0].mxu0 %v147
  %v356 = vpop.f32.mrb[0].mxu0
  %v357 = vadd.f32 %v71, %v356
  %v358 = vpop.f32.mrb[0].mxu0
  %359 = vmatprep.mubr.f32.mxu0 0.0
  %360 = vmatmul.mubr.f32.gmra.mrb[0].mxu0 %v150
  %v361 = vpop.f32.mrb[0].mxu0
  %v362 = vadd.f32 %v71, %v361
  %v363 = vpop.f32.mrb[0].mxu0
  %364 = vmatprep.mubr.f32.mxu0 0.0
  %365 = vmatmul.mubr.f32.gmra.mrb[0].mxu0 %v153
  %v366 = vpop.f32.mrb[0].mxu0
  %v367 = vadd.f32 %v71, %v366
  %v368 = vpop.f32.mrb[0].mxu0
  %369 = vmatprep.mubr.f32.mxu0 0.0
  %370 = vmatmul.mubr.f32.gmra.mrb[0].mxu0 %v156
  %v371 = vpop.f32.mrb[0].mxu0
  %v372 = vadd.f32 %v71, %v371
  %v373 = vpop.f32.mrb[0].mxu0
  %374 = vmatprep.mubr.f32.mxu0 0.0
  %375 = vmatmul.mubr.f32.gmra.mrb[0].mxu0 %v159
  %v376 = vpop.f32.mrb[0].mxu0
  %v377 = vadd.f32 %v71, %v376
  %v378 = vpop.f32.mrb[0].mxu0
  %379 = vmatprep.mubr.f32.mxu0 0.0
  %380 = vmatmul.mubr.f32.gmra.mrb[0].mxu0 %v162
  %v381 = vpop.f32.mrb[0].mxu0
  %v382 = vadd.f32 %v71, %v381
  %v383 = vpop.f32.mrb[0].mxu0
  %384 = vmatprep.mubr.f32.mxu0 0.0
  %385 = vmatmul.mubr.f32.gmra.mrb[0].mxu0 %v165
  %v386 = vpop.f32.mrb[0].mxu0
  %v387 = vadd.f32 %v71, %v386
  %v388 = vpop.f32.mrb[0].mxu0
  %389 = vmatprep.mubr.f32.mxu0 0.0
  %390 = vmatmul.mubr.f32.gmra.mrb[0].mxu0 %v168
  %v391 = vpop.f32.mrb[0].mxu0
  %v392 = vadd.f32 %v71, %v391
  %v393 = vpop.f32.mrb[0].mxu0
  %394 = vdwg.mxu0
  %v395 = vmul.f32 %v237, 0.2
  %v396 = vmul.f32 %v242, 0.2
  %v397 = vmul.f32 %v247, 0.2
  %v398 = vmul.f32 %v252, 0.2
  %v399 = vmul.f32 %v257, 0.2
  %v400 = vmul.f32 %v262, 0.2
  %v401 = vmul.f32 %v267, 0.2
  %v402 = vmul.f32 %v272, 0.2
  %v403 = vmul.f32 %v277, 0.2
  %v404 = vmul.f32 %v282, 0.2
  %v405 = vmul.f32 %v287, 0.2
  %v406 = vmul.f32 %v292, 0.2
  %v407 = vmul.f32 %v297, 0.2
  %v408 = vmul.f32 %v302, 0.2
  %v409 = vmul.f32 %v307, 0.2
  %v410 = vmul.f32 %v312, 0.2
  %v411 = vmul.f32 %v317, 0.2
  %v412 = vmul.f32 %v322, 0.2
  %v413 = vmul.f32 %v327, 0.2
  %v414 = vmul.f32 %v332, 0.2
  %v415 = vmul.f32 %v337, 0.2
  %v416 = vmul.f32 %v342, 0.2
  %v417 = vmul.f32 %v347, 0.2
  %v418 = vmul.f32 %v352, 0.2
  %v419 = vmul.f32 %v357, 0.2
  %v420 = vmul.f32 %v362, 0.2
  %v421 = vmul.f32 %v367, 0.2
  %v422 = vmul.f32 %v372, 0.2
  %v423 = vmul.f32 %v377, 0.2
  %v424 = vmul.f32 %v382, 0.2
  %v425 = vmul.f32 %v387, 0.2
  %v426 = vmul.f32 %v392, 0.2
  %v427 = vmax.f32 %v237, %v395
  %v428 = vmax.f32 %v242, %v396
  %v429 = vmax.f32 %v247, %v397
  %v430 = vmax.f32 %v252, %v398
  %v431 = vmax.f32 %v257, %v399
  %v432 = vmax.f32 %v262, %v400
  %v433 = vmax.f32 %v267, %v401
  %v434 = vmax.f32 %v272, %v402
  %v435 = vmax.f32 %v277, %v403
  %v436 = vmax.f32 %v282, %v404
  %v437 = vmax.f32 %v287, %v405
  %v438 = vmax.f32 %v292, %v406
  %v439 = vmax.f32 %v297, %v407
  %v440 = vmax.f32 %v302, %v408
  %v441 = vmax.f32 %v307, %v409
  %v442 = vmax.f32 %v312, %v410
  %v443 = vmax.f32 %v317, %v411
  %v444 = vmax.f32 %v322, %v412
  %v445 = vmax.f32 %v327, %v413
  %v446 = vmax.f32 %v332, %v414
  %v447 = vmax.f32 %v337, %v415
  %v448 = vmax.f32 %v342, %v416
  %v449 = vmax.f32 %v347, %v417
  %v450 = vmax.f32 %v352, %v418
  %v451 = vmax.f32 %v357, %v419
  %v452 = vmax.f32 %v362, %v420
  %v453 = vmax.f32 %v367, %v421
  %v454 = vmax.f32 %v372, %v422
  %v455 = vmax.f32 %v377, %v423
  %v456 = vmax.f32 %v382, %v424
  %v457 = vmax.f32 %v387, %v425
  %v458 = vmax.f32 %v392, %v426
  %v459 = vld [vmem:[%s3] sm:$0xff]
  %v460 = vld [vmem:[%s3 + $0x8] sm:$0xff]
  %v461 = vld [vmem:[%s3 + $0x10] sm:$0xff]
  %v462 = vld [vmem:[%s3 + $0x18] sm:$0xff]
  %v463 = vld [vmem:[%s3 + $0x20] sm:$0xff]
  %v464 = vld [vmem:[%s3 + $0x28] sm:$0xff]
  %v465 = vld [vmem:[%s3 + $0x30] sm:$0xff]
  %v466 = vld [vmem:[%s3 + $0x38] sm:$0xff]
  %v467 = vld [vmem:[%s3 + $0x40] sm:$0xff]
  %v468 = vld [vmem:[%s3 + $0x48] sm:$0xff]
  %v469 = vld [vmem:[%s3 + $0x50] sm:$0xff]
  %v470 = vld [vmem:[%s3 + $0x58] sm:$0xff]
  %v471 = vld [vmem:[%s3 + $0x60] sm:$0xff]
  %v472 = vld [vmem:[%s3 + $0x68] sm:$0xff]
  %v473 = vld [vmem:[%s3 + $0x70] sm:$0xff]
  %v474 = vld [vmem:[%s3 + $0x78] sm:$0xff]
  %v475 = vld [vmem:[%s4] sm:$0x1]
  %v477 = vlaneseq
  %v478 = vshrl.u32 %v477, 7
  %v479 = vsub.s32 0, %v478
  %v480 = vrot.slane %v475, %v479
  %482 = vmatprep.subr.mxu0 0.0
  %483 = vmatpush1.msra.mxu0 %v459
  %484 = vmatprep.subr.mxu0 0.0
  %485 = vmatpush1.msra.mxu0 %v460
  %486 = vmatprep.subr.mxu0 0.0
  %487 = vmatpush1.msra.mxu0 %v461
  %488 = vmatprep.subr.mxu0 0.0
  %489 = vmatpush1.msra.mxu0 %v462
  %490 = vmatprep.subr.mxu0 0.0
  %491 = vmatpush1.msra.mxu0 %v463
  %492 = vmatprep.subr.mxu0 0.0
  %493 = vmatpush1.msra.mxu0 %v464
  %494 = vmatprep.subr.mxu0 0.0
  %495 = vmatpush1.msra.mxu0 %v465
  %496 = vmatprep.subr.mxu0 0.0
  %497 = vmatpush1.msra.mxu0 %v466
  %498 = vmatprep.subr.mxu0 0.0
  %499 = vmatpush1.msra.mxu0 %v467
  %500 = vmatprep.subr.mxu0 0.0
  %501 = vmatpush1.msra.mxu0 %v468
  %502 = vmatprep.subr.mxu0 0.0
  %503 = vmatpush1.msra.mxu0 %v469
  %504 = vmatprep.subr.mxu0 0.0
  %505 = vmatpush1.msra.mxu0 %v470
  %506 = vmatprep.subr.mxu0 0.0
  %507 = vmatpush1.msra.mxu0 %v471
  %508 = vmatprep.subr.mxu0 0.0
  %509 = vmatpush1.msra.mxu0 %v472
  %510 = vmatprep.subr.mxu0 0.0
  %511 = vmatpush1.msra.mxu0 %v473
  %512 = vmatprep.subr.mxu0 0.0
  %513 = vmatpush1.msra.mxu0 %v474
  %514 = vmatprep.subr.mxu0 0.0
  %515 = vmatpush1.msra.mxu0 0.0
  %516 = vmatprep.subr.mxu0 0.0
  %517 = vmatpush1.msra.mxu0 0.0
  %518 = vmatprep.subr.mxu0 0.0
  %519 = vmatpush1.msra.mxu0 0.0
  %520 = vmatprep.subr.mxu0 0.0
  %521 = vmatpush1.msra.mxu0 0.0
  %522 = vmatprep.subr.mxu0 0.0
  %523 = vmatpush1.msra.mxu0 0.0
  %524 = vmatprep.subr.mxu0 0.0
  %525 = vmatpush1.msra.mxu0 0.0
  %526 = vmatprep.subr.mxu0 0.0
  %527 = vmatpush1.msra.mxu0 0.0
  %528 = vmatprep.subr.mxu0 0.0
  %529 = vmatpush1.msra.mxu0 0.0
  %530 = vmatprep.subr.mxu0 0.0
  %531 = vmatpush1.msra.mxu0 0.0
  %532 = vmatprep.subr.mxu0 0.0
  %533 = vmatpush1.msra.mxu0 0.0
  %534 = vmatprep.subr.mxu0 0.0
  %535 = vmatpush1.msra.mxu0 0.0
  %536 = vmatprep.subr.mxu0 0.0
  %537 = vmatpush1.msra.mxu0 0.0
  %538 = vmatprep.subr.mxu0 0.0
  %539 = vmatpush1.msra.mxu0 0.0
  %540 = vmatprep.subr.mxu0 0.0
  %541 = vmatpush1.msra.mxu0 0.0
  %542 = vmatprep.subr.mxu0 0.0
  %543 = vmatpush1.msra.mxu0 0.0
  %544 = vmatprep.subr.mxu0 0.0
  %545 = vmatpush1.msra.mxu0 0.0
  %546 = vmatprep.mubr.f32.mxu0 0.0
  %547 = vmatmul.mubr.f32.gmra.mrb[0].mxu0 %v427
  %v548 = vpop.f32.mrb[0].mxu0
  %v549 = vadd.f32 %v480, %v548
  %v550 = vpop.f32.mrb[0].mxu0
  %551 = vmatprep.mubr.f32.mxu0 0.0
  %552 = vmatmul.mubr.f32.gmra.mrb[0].mxu0 %v428
  %v553 = vpop.f32.mrb[0].mxu0
  %v554 = vadd.f32 %v480, %v553
  %v555 = vpop.f32.mrb[0].mxu0
  %556 = vmatprep.mubr.f32.mxu0 0.0
  %557 = vmatmul.mubr.f32.gmra.mrb[0].mxu0 %v429
  %v558 = vpop.f32.mrb[0].mxu0
  %v559 = vadd.f32 %v480, %v558
  %v560 = vpop.f32.mrb[0].mxu0
  %561 = vmatprep.mubr.f32.mxu0 0.0
  %562 = vmatmul.mubr.f32.gmra.mrb[0].mxu0 %v430
  %v563 = vpop.f32.mrb[0].mxu0
  %v564 = vadd.f32 %v480, %v563
  %v565 = vpop.f32.mrb[0].mxu0
  %566 = vmatprep.mubr.f32.mxu0 0.0
  %567 = vmatmul.mubr.f32.gmra.mrb[0].mxu0 %v431
  %v568 = vpop.f32.mrb[0].mxu0
  %v569 = vadd.f32 %v480, %v568
  %v570 = vpop.f32.mrb[0].mxu0
  %571 = vmatprep.mubr.f32.mxu0 0.0
  %572 = vmatmul.mubr.f32.gmra.mrb[0].mxu0 %v432
  %v573 = vpop.f32.mrb[0].mxu0
  %v574 = vadd.f32 %v480, %v573
  %v575 = vpop.f32.mrb[0].mxu0
  %576 = vmatprep.mubr.f32.mxu0 0.0
  %577 = vmatmul.mubr.f32.gmra.mrb[0].mxu0 %v433
  %v578 = vpop.f32.mrb[0].mxu0
  %v579 = vadd.f32 %v480, %v578
  %v580 = vpop.f32.mrb[0].mxu0
  %581 = vmatprep.mubr.f32.mxu0 0.0
  %582 = vmatmul.mubr.f32.gmra.mrb[0].mxu0 %v434
  %v583 = vpop.f32.mrb[0].mxu0
  %v584 = vadd.f32 %v480, %v583
  %v585 = vpop.f32.mrb[0].mxu0
  %586 = vmatprep.mubr.f32.mxu0 0.0
  %587 = vmatmul.mubr.f32.gmra.mrb[0].mxu0 %v435
  %v588 = vpop.f32.mrb[0].mxu0
  %v589 = vadd.f32 %v480, %v588
  %v590 = vpop.f32.mrb[0].mxu0
  %591 = vmatprep.mubr.f32.mxu0 0.0
  %592 = vmatmul.mubr.f32.gmra.mrb[0].mxu0 %v436
  %v593 = vpop.f32.mrb[0].mxu0
  %v594 = vadd.f32 %v480, %v593
  %v595 = vpop.f32.mrb[0].mxu0
  %596 = vmatprep.mubr.f32.mxu0 0.0
  %597 = vmatmul.mubr.f32.gmra.mrb[0].mxu0 %v437
  %v598 = vpop.f32.mrb[0].mxu0
  %v599 = vadd.f32 %v480, %v598
  %v600 = vpop.f32.mrb[0].mxu0
  %601 = vmatprep.mubr.f32.mxu0 0.0
  %602 = vmatmul.mubr.f32.gmra.mrb[0].mxu0 %v438
  %v603 = vpop.f32.mrb[0].mxu0
  %v604 = vadd.f32 %v480, %v603
  %v605 = vpop.f32.mrb[0].mxu0
  %606 = vmatprep.mubr.f32.mxu0 0.0
  %607 = vmatmul.mubr.f32.gmra.mrb[0].mxu0 %v439
  %v608 = vpop.f32.mrb[0].mxu0
  %v609 = vadd.f32 %v480, %v608
  %v610 = vpop.f32.mrb[0].mxu0
  %611 = vmatprep.mubr.f32.mxu0 0.0
  %612 = vmatmul.mubr.f32.gmra.mrb[0].mxu0 %v440
  %v613 = vpop.f32.mrb[0].mxu0
  %v614 = vadd.f32 %v480, %v613
  %v615 = vpop.f32.mrb[0].mxu0
  %616 = vmatprep.mubr.f32.mxu0 0.0
  %617 = vmatmul.mubr.f32.gmra.mrb[0].mxu0 %v441
  %v618 = vpop.f32.mrb[0].mxu0
  %v619 = vadd.f32 %v480, %v618
  %v620 = vpop.f32.mrb[0].mxu0
  %621 = vmatprep.mubr.f32.mxu0 0.0
  %622 = vmatmul.mubr.f32.gmra.mrb[0].mxu0 %v442
  %v623 = vpop.f32.mrb[0].mxu0
  %v624 = vadd.f32 %v480, %v623
  %v625 = vpop.f32.mrb[0].mxu0
  %626 = vmatprep.mubr.f32.mxu0 0.0
  %627 = vmatmul.mubr.f32.gmra.mrb[0].mxu0 %v443
  %v628 = vpop.f32.mrb[0].mxu0
  %v629 = vadd.f32 %v480, %v628
  %v630 = vpop.f32.mrb[0].mxu0
  %631 = vmatprep.mubr.f32.mxu0 0.0
  %632 = vmatmul.mubr.f32.gmra.mrb[0].mxu0 %v444
  %v633 = vpop.f32.mrb[0].mxu0
  %v634 = vadd.f32 %v480, %v633
  %v635 = vpop.f32.mrb[0].mxu0
  %636 = vmatprep.mubr.f32.mxu0 0.0
  %637 = vmatmul.mubr.f32.gmra.mrb[0].mxu0 %v445
  %v638 = vpop.f32.mrb[0].mxu0
  %v639 = vadd.f32 %v480, %v638
  %v640 = vpop.f32.mrb[0].mxu0
  %641 = vmatprep.mubr.f32.mxu0 0.0
  %642 = vmatmul.mubr.f32.gmra.mrb[0].mxu0 %v446
  %v643 = vpop.f32.mrb[0].mxu0
  %v644 = vadd.f32 %v480, %v643
  %v645 = vpop.f32.mrb[0].mxu0
  %646 = vmatprep.mubr.f32.mxu0 0.0
  %647 = vmatmul.mubr.f32.gmra.mrb[0].mxu0 %v447
  %v648 = vpop.f32.mrb[0].mxu0
  %v649 = vadd.f32 %v480, %v648
  %v650 = vpop.f32.mrb[0].mxu0
  %651 = vmatprep.mubr.f32.mxu0 0.0
  %652 = vmatmul.mubr.f32.gmra.mrb[0].mxu0 %v448
  %v653 = vpop.f32.mrb[0].mxu0
  %v654 = vadd.f32 %v480, %v653
  %v655 = vpop.f32.mrb[0].mxu0
  %656 = vmatprep.mubr.f32.mxu0 0.0
  %657 = vmatmul.mubr.f32.gmra.mrb[0].mxu0 %v449
  %v658 = vpop.f32.mrb[0].mxu0
  %v659 = vadd.f32 %v480, %v658
  %v660 = vpop.f32.mrb[0].mxu0
  %661 = vmatprep.mubr.f32.mxu0 0.0
  %662 = vmatmul.mubr.f32.gmra.mrb[0].mxu0 %v450
  %v663 = vpop.f32.mrb[0].mxu0
  %v664 = vadd.f32 %v480, %v663
  %v665 = vpop.f32.mrb[0].mxu0
  %666 = vmatprep.mubr.f32.mxu0 0.0
  %667 = vmatmul.mubr.f32.gmra.mrb[0].mxu0 %v451
  %v668 = vpop.f32.mrb[0].mxu0
  %v669 = vadd.f32 %v480, %v668
  %v670 = vpop.f32.mrb[0].mxu0
  %671 = vmatprep.mubr.f32.mxu0 0.0
  %672 = vmatmul.mubr.f32.gmra.mrb[0].mxu0 %v452
  %v673 = vpop.f32.mrb[0].mxu0
  %v674 = vadd.f32 %v480, %v673
  %v675 = vpop.f32.mrb[0].mxu0
  %676 = vmatprep.mubr.f32.mxu0 0.0
  %677 = vmatmul.mubr.f32.gmra.mrb[0].mxu0 %v453
  %v678 = vpop.f32.mrb[0].mxu0
  %v679 = vadd.f32 %v480, %v678
  %v680 = vpop.f32.mrb[0].mxu0
  %681 = vmatprep.mubr.f32.mxu0 0.0
  %682 = vmatmul.mubr.f32.gmra.mrb[0].mxu0 %v454
  %v683 = vpop.f32.mrb[0].mxu0
  %v684 = vadd.f32 %v480, %v683
  %v685 = vpop.f32.mrb[0].mxu0
  %686 = vmatprep.mubr.f32.mxu0 0.0
  %687 = vmatmul.mubr.f32.gmra.mrb[0].mxu0 %v455
  %v688 = vpop.f32.mrb[0].mxu0
  %v689 = vadd.f32 %v480, %v688
  %v690 = vpop.f32.mrb[0].mxu0
  %691 = vmatprep.mubr.f32.mxu0 0.0
  %692 = vmatmul.mubr.f32.gmra.mrb[0].mxu0 %v456
  %v693 = vpop.f32.mrb[0].mxu0
  %v694 = vadd.f32 %v480, %v693
  %v695 = vpop.f32.mrb[0].mxu0
  %696 = vmatprep.mubr.f32.mxu0 0.0
  %697 = vmatmul.mubr.f32.gmra.mrb[0].mxu0 %v457
  %v698 = vpop.f32.mrb[0].mxu0
  %v699 = vadd.f32 %v480, %v698
  %v700 = vpop.f32.mrb[0].mxu0
  %701 = vmatprep.mubr.f32.mxu0 0.0
  %702 = vmatmul.mubr.f32.gmra.mrb[0].mxu0 %v458
  %v703 = vpop.f32.mrb[0].mxu0
  %v704 = vadd.f32 %v480, %v703
  %v705 = vpop.f32.mrb[0].mxu0
  %706 = vdwg.mxu0
  %v707 = vmul.f32 %v549, 0.2
  %v708 = vmul.f32 %v554, 0.2
  %v709 = vmul.f32 %v559, 0.2
  %v710 = vmul.f32 %v564, 0.2
  %v711 = vmul.f32 %v569, 0.2
  %v712 = vmul.f32 %v574, 0.2
  %v713 = vmul.f32 %v579, 0.2
  %v714 = vmul.f32 %v584, 0.2
  %v715 = vmul.f32 %v589, 0.2
  %v716 = vmul.f32 %v594, 0.2
  %v717 = vmul.f32 %v599, 0.2
  %v718 = vmul.f32 %v604, 0.2
  %v719 = vmul.f32 %v609, 0.2
  %v720 = vmul.f32 %v614, 0.2
  %v721 = vmul.f32 %v619, 0.2
  %v722 = vmul.f32 %v624, 0.2
  %v723 = vmul.f32 %v629, 0.2
  %v724 = vmul.f32 %v634, 0.2
  %v725 = vmul.f32 %v639, 0.2
  %v726 = vmul.f32 %v644, 0.2
  %v727 = vmul.f32 %v649, 0.2
  %v728 = vmul.f32 %v654, 0.2
  %v729 = vmul.f32 %v659, 0.2
  %v730 = vmul.f32 %v664, 0.2
  %v731 = vmul.f32 %v669, 0.2
  %v732 = vmul.f32 %v674, 0.2
  %v733 = vmul.f32 %v679, 0.2
  %v734 = vmul.f32 %v684, 0.2
  %v735 = vmul.f32 %v689, 0.2
  %v736 = vmul.f32 %v694, 0.2
  %v737 = vmul.f32 %v699, 0.2
  %v738 = vmul.f32 %v704, 0.2
  %v739 = vmax.f32 %v549, %v707
  %v740 = vmax.f32 %v554, %v708
  %v741 = vmax.f32 %v559, %v709
  %v742 = vmax.f32 %v564, %v710
  %v743 = vmax.f32 %v569, %v711
  %v744 = vmax.f32 %v574, %v712
  %v745 = vmax.f32 %v579, %v713
  %v746 = vmax.f32 %v584, %v714
  %v747 = vmax.f32 %v589, %v715
  %v748 = vmax.f32 %v594, %v716
  %v749 = vmax.f32 %v599, %v717
  %v750 = vmax.f32 %v604, %v718
  %v751 = vmax.f32 %v609, %v719
  %v752 = vmax.f32 %v614, %v720
  %v753 = vmax.f32 %v619, %v721
  %v754 = vmax.f32 %v624, %v722
  %v755 = vmax.f32 %v629, %v723
  %v756 = vmax.f32 %v634, %v724
  %v757 = vmax.f32 %v639, %v725
  %v758 = vmax.f32 %v644, %v726
  %v759 = vmax.f32 %v649, %v727
  %v760 = vmax.f32 %v654, %v728
  %v761 = vmax.f32 %v659, %v729
  %v762 = vmax.f32 %v664, %v730
  %v763 = vmax.f32 %v669, %v731
  %v764 = vmax.f32 %v674, %v732
  %v765 = vmax.f32 %v679, %v733
  %v766 = vmax.f32 %v684, %v734
  %v767 = vmax.f32 %v689, %v735
  %v768 = vmax.f32 %v694, %v736
  %v769 = vmax.f32 %v699, %v737
  %v770 = vmax.f32 %v704, %v738
  %v771 = vld [vmem:[%s5] sm:$0xff]
  %v772 = vld [vmem:[%s5 + $0x8] sm:$0xff]
  %v773 = vld [vmem:[%s5 + $0x10] sm:$0xff]
  %v774 = vld [vmem:[%s5 + $0x18] sm:$0xff]
  %v775 = vld [vmem:[%s5 + $0x20] sm:$0xff]
  %v776 = vld [vmem:[%s5 + $0x28] sm:$0xff]
  %v777 = vld [vmem:[%s5 + $0x30] sm:$0xff]
  %v778 = vld [vmem:[%s5 + $0x38] sm:$0xff]
  %v779 = vld [vmem:[%s5 + $0x40] sm:$0xff]
  %v780 = vld [vmem:[%s5 + $0x48] sm:$0xff]
  %v781 = vld [vmem:[%s5 + $0x50] sm:$0xff]
  %v782 = vld [vmem:[%s5 + $0x58] sm:$0xff]
  %v783 = vld [vmem:[%s5 + $0x60] sm:$0xff]
  %v784 = vld [vmem:[%s5 + $0x68] sm:$0xff]
  %v785 = vld [vmem:[%s5 + $0x70] sm:$0xff]
  %v786 = vld [vmem:[%s5 + $0x78] sm:$0xff]
  %v787 = vld [vmem:[%s6] sm:$0x1]
  %v789 = vlaneseq
  %v790 = vshrl.u32 %v789, 7
  %v791 = vsub.s32 0, %v790
  %v792 = vrot.slane %v787, %v791
  %794 = vmatprep.subr.mxu0 0.0
  %795 = vmatpush1.msra.mxu0 %v771
  %796 = vmatprep.subr.mxu0 0.0
  %797 = vmatpush1.msra.mxu0 %v772
  %798 = vmatprep.subr.mxu0 0.0
  %799 = vmatpush1.msra.mxu0 %v773
  %800 = vmatprep.subr.mxu0 0.0
  %801 = vmatpush1.msra.mxu0 %v774
  %802 = vmatprep.subr.mxu0 0.0
  %803 = vmatpush1.msra.mxu0 %v775
  %804 = vmatprep.subr.mxu0 0.0
  %805 = vmatpush1.msra.mxu0 %v776
  %806 = vmatprep.subr.mxu0 0.0
  %807 = vmatpush1.msra.mxu0 %v777
  %808 = vmatprep.subr.mxu0 0.0
  %809 = vmatpush1.msra.mxu0 %v778
  %810 = vmatprep.subr.mxu0 0.0
  %811 = vmatpush1.msra.mxu0 %v779
  %812 = vmatprep.subr.mxu0 0.0
  %813 = vmatpush1.msra.mxu0 %v780
  %814 = vmatprep.subr.mxu0 0.0
  %815 = vmatpush1.msra.mxu0 %v781
  %816 = vmatprep.subr.mxu0 0.0
  %817 = vmatpush1.msra.mxu0 %v782
  %818 = vmatprep.subr.mxu0 0.0
  %819 = vmatpush1.msra.mxu0 %v783
  %820 = vmatprep.subr.mxu0 0.0
  %821 = vmatpush1.msra.mxu0 %v784
  %822 = vmatprep.subr.mxu0 0.0
  %823 = vmatpush1.msra.mxu0 %v785
  %824 = vmatprep.subr.mxu0 0.0
  %825 = vmatpush1.msra.mxu0 %v786
  %826 = vmatprep.subr.mxu0 0.0
  %827 = vmatpush1.msra.mxu0 0.0
  %828 = vmatprep.subr.mxu0 0.0
  %829 = vmatpush1.msra.mxu0 0.0
  %830 = vmatprep.subr.mxu0 0.0
  %831 = vmatpush1.msra.mxu0 0.0
  %832 = vmatprep.subr.mxu0 0.0
  %833 = vmatpush1.msra.mxu0 0.0
  %834 = vmatprep.subr.mxu0 0.0
  %835 = vmatpush1.msra.mxu0 0.0
  %836 = vmatprep.subr.mxu0 0.0
  %837 = vmatpush1.msra.mxu0 0.0
  %838 = vmatprep.subr.mxu0 0.0
  %839 = vmatpush1.msra.mxu0 0.0
  %840 = vmatprep.subr.mxu0 0.0
  %841 = vmatpush1.msra.mxu0 0.0
  %842 = vmatprep.subr.mxu0 0.0
  %843 = vmatpush1.msra.mxu0 0.0
  %844 = vmatprep.subr.mxu0 0.0
  %845 = vmatpush1.msra.mxu0 0.0
  %846 = vmatprep.subr.mxu0 0.0
  %847 = vmatpush1.msra.mxu0 0.0
  %848 = vmatprep.subr.mxu0 0.0
  %849 = vmatpush1.msra.mxu0 0.0
  %850 = vmatprep.subr.mxu0 0.0
  %851 = vmatpush1.msra.mxu0 0.0
  %852 = vmatprep.subr.mxu0 0.0
  %853 = vmatpush1.msra.mxu0 0.0
  %854 = vmatprep.subr.mxu0 0.0
  %855 = vmatpush1.msra.mxu0 0.0
  %856 = vmatprep.subr.mxu0 0.0
  %857 = vmatpush1.msra.mxu0 0.0
  %858 = vmatprep.mubr.f32.mxu0 0.0
  %859 = vmatmul.mubr.f32.gmra.mrb[0].mxu0 %v739
  %v860 = vpop.f32.mrb[0].mxu0
  %v861 = vadd.f32 %v792, %v860
  %v862 = vpop.f32.mrb[0].mxu0
  %863 = vmatprep.mubr.f32.mxu0 0.0
  %864 = vmatmul.mubr.f32.gmra.mrb[0].mxu0 %v740
  %v865 = vpop.f32.mrb[0].mxu0
  %v866 = vadd.f32 %v792, %v865
  %v867 = vpop.f32.mrb[0].mxu0
  %868 = vmatprep.mubr.f32.mxu0 0.0
  %869 = vmatmul.mubr.f32.gmra.mrb[0].mxu0 %v741
  %v870 = vpop.f32.mrb[0].mxu0
  %v871 = vadd.f32 %v792, %v870
  %v872 = vpop.f32.mrb[0].mxu0
  %873 = vmatprep.mubr.f32.mxu0 0.0
  %874 = vmatmul.mubr.f32.gmra.mrb[0].mxu0 %v742
  %v875 = vpop.f32.mrb[0].mxu0
  %v876 = vadd.f32 %v792, %v875
  %v877 = vpop.f32.mrb[0].mxu0
  %878 = vmatprep.mubr.f32.mxu0 0.0
  %879 = vmatmul.mubr.f32.gmra.mrb[0].mxu0 %v743
  %v880 = vpop.f32.mrb[0].mxu0
  %v881 = vadd.f32 %v792, %v880
  %v882 = vpop.f32.mrb[0].mxu0
  %883 = vmatprep.mubr.f32.mxu0 0.0
  %884 = vmatmul.mubr.f32.gmra.mrb[0].mxu0 %v744
  %v885 = vpop.f32.mrb[0].mxu0
  %v886 = vadd.f32 %v792, %v885
  %v887 = vpop.f32.mrb[0].mxu0
  %888 = vmatprep.mubr.f32.mxu0 0.0
  %889 = vmatmul.mubr.f32.gmra.mrb[0].mxu0 %v745
  %v890 = vpop.f32.mrb[0].mxu0
  %v891 = vadd.f32 %v792, %v890
  %v892 = vpop.f32.mrb[0].mxu0
  %893 = vmatprep.mubr.f32.mxu0 0.0
  %894 = vmatmul.mubr.f32.gmra.mrb[0].mxu0 %v746
  %v895 = vpop.f32.mrb[0].mxu0
  %v896 = vadd.f32 %v792, %v895
  %v897 = vpop.f32.mrb[0].mxu0
  %898 = vmatprep.mubr.f32.mxu0 0.0
  %899 = vmatmul.mubr.f32.gmra.mrb[0].mxu0 %v747
  %v900 = vpop.f32.mrb[0].mxu0
  %v901 = vadd.f32 %v792, %v900
  %v902 = vpop.f32.mrb[0].mxu0
  %903 = vmatprep.mubr.f32.mxu0 0.0
  %904 = vmatmul.mubr.f32.gmra.mrb[0].mxu0 %v748
  %v905 = vpop.f32.mrb[0].mxu0
  %v906 = vadd.f32 %v792, %v905
  %v907 = vpop.f32.mrb[0].mxu0
  %908 = vmatprep.mubr.f32.mxu0 0.0
  %909 = vmatmul.mubr.f32.gmra.mrb[0].mxu0 %v749
  %v910 = vpop.f32.mrb[0].mxu0
  %v911 = vadd.f32 %v792, %v910
  %v912 = vpop.f32.mrb[0].mxu0
  %913 = vmatprep.mubr.f32.mxu0 0.0
  %914 = vmatmul.mubr.f32.gmra.mrb[0].mxu0 %v750
  %v915 = vpop.f32.mrb[0].mxu0
  %v916 = vadd.f32 %v792, %v915
  %v917 = vpop.f32.mrb[0].mxu0
  %918 = vmatprep.mubr.f32.mxu0 0.0
  %919 = vmatmul.mubr.f32.gmra.mrb[0].mxu0 %v751
  %v920 = vpop.f32.mrb[0].mxu0
  %v921 = vadd.f32 %v792, %v920
  %v922 = vpop.f32.mrb[0].mxu0
  %923 = vmatprep.mubr.f32.mxu0 0.0
  %924 = vmatmul.mubr.f32.gmra.mrb[0].mxu0 %v752
  %v925 = vpop.f32.mrb[0].mxu0
  %v926 = vadd.f32 %v792, %v925
  %v927 = vpop.f32.mrb[0].mxu0
  %928 = vmatprep.mubr.f32.mxu0 0.0
  %929 = vmatmul.mubr.f32.gmra.mrb[0].mxu0 %v753
  %v930 = vpop.f32.mrb[0].mxu0
  %v931 = vadd.f32 %v792, %v930
  %v932 = vpop.f32.mrb[0].mxu0
  %933 = vmatprep.mubr.f32.mxu0 0.0
  %934 = vmatmul.mubr.f32.gmra.mrb[0].mxu0 %v754
  %v935 = vpop.f32.mrb[0].mxu0
  %v936 = vadd.f32 %v792, %v935
  %v937 = vpop.f32.mrb[0].mxu0
  %938 = vmatprep.mubr.f32.mxu0 0.0
  %939 = vmatmul.mubr.f32.gmra.mrb[0].mxu0 %v755
  %v940 = vpop.f32.mrb[0].mxu0
  %v941 = vadd.f32 %v792, %v940
  %v942 = vpop.f32.mrb[0].mxu0
  %943 = vmatprep.mubr.f32.mxu0 0.0
  %944 = vmatmul.mubr.f32.gmra.mrb[0].mxu0 %v756
  %v945 = vpop.f32.mrb[0].mxu0
  %v946 = vadd.f32 %v792, %v945
  %v947 = vpop.f32.mrb[0].mxu0
  %948 = vmatprep.mubr.f32.mxu0 0.0
  %949 = vmatmul.mubr.f32.gmra.mrb[0].mxu0 %v757
  %v950 = vpop.f32.mrb[0].mxu0
  %v951 = vadd.f32 %v792, %v950
  %v952 = vpop.f32.mrb[0].mxu0
  %953 = vmatprep.mubr.f32.mxu0 0.0
  %954 = vmatmul.mubr.f32.gmra.mrb[0].mxu0 %v758
  %v955 = vpop.f32.mrb[0].mxu0
  %v956 = vadd.f32 %v792, %v955
  %v957 = vpop.f32.mrb[0].mxu0
  %958 = vmatprep.mubr.f32.mxu0 0.0
  %959 = vmatmul.mubr.f32.gmra.mrb[0].mxu0 %v759
  %v960 = vpop.f32.mrb[0].mxu0
  %v961 = vadd.f32 %v792, %v960
  %v962 = vpop.f32.mrb[0].mxu0
  %963 = vmatprep.mubr.f32.mxu0 0.0
  %964 = vmatmul.mubr.f32.gmra.mrb[0].mxu0 %v760
  %v965 = vpop.f32.mrb[0].mxu0
  %v966 = vadd.f32 %v792, %v965
  %v967 = vpop.f32.mrb[0].mxu0
  %968 = vmatprep.mubr.f32.mxu0 0.0
  %969 = vmatmul.mubr.f32.gmra.mrb[0].mxu0 %v761
  %v970 = vpop.f32.mrb[0].mxu0
  %v971 = vadd.f32 %v792, %v970
  %v972 = vpop.f32.mrb[0].mxu0
  %973 = vmatprep.mubr.f32.mxu0 0.0
  %974 = vmatmul.mubr.f32.gmra.mrb[0].mxu0 %v762
  %v975 = vpop.f32.mrb[0].mxu0
  %v976 = vadd.f32 %v792, %v975
  %v977 = vpop.f32.mrb[0].mxu0
  %978 = vmatprep.mubr.f32.mxu0 0.0
  %979 = vmatmul.mubr.f32.gmra.mrb[0].mxu0 %v763
  %v980 = vpop.f32.mrb[0].mxu0
  %v981 = vadd.f32 %v792, %v980
  %v982 = vpop.f32.mrb[0].mxu0
  %983 = vmatprep.mubr.f32.mxu0 0.0
  %984 = vmatmul.mubr.f32.gmra.mrb[0].mxu0 %v764
  %v985 = vpop.f32.mrb[0].mxu0
  %v986 = vadd.f32 %v792, %v985
  %v987 = vpop.f32.mrb[0].mxu0
  %988 = vmatprep.mubr.f32.mxu0 0.0
  %989 = vmatmul.mubr.f32.gmra.mrb[0].mxu0 %v765
  %v990 = vpop.f32.mrb[0].mxu0
  %v991 = vadd.f32 %v792, %v990
  %v992 = vpop.f32.mrb[0].mxu0
  %993 = vmatprep.mubr.f32.mxu0 0.0
  %994 = vmatmul.mubr.f32.gmra.mrb[0].mxu0 %v766
  %v995 = vpop.f32.mrb[0].mxu0
  %v996 = vadd.f32 %v792, %v995
  %v997 = vpop.f32.mrb[0].mxu0
  %998 = vmatprep.mubr.f32.mxu0 0.0
  %999 = vmatmul.mubr.f32.gmra.mrb[0].mxu0 %v767
  %v1000 = vpop.f32.mrb[0].mxu0
  %v1001 = vadd.f32 %v792, %v1000
  %v1002 = vpop.f32.mrb[0].mxu0
  %1003 = vmatprep.mubr.f32.mxu0 0.0
  %1004 = vmatmul.mubr.f32.gmra.mrb[0].mxu0 %v768
  %v1005 = vpop.f32.mrb[0].mxu0
  %v1006 = vadd.f32 %v792, %v1005
  %v1007 = vpop.f32.mrb[0].mxu0
  %1008 = vmatprep.mubr.f32.mxu0 0.0
  %1009 = vmatmul.mubr.f32.gmra.mrb[0].mxu0 %v769
  %v1010 = vpop.f32.mrb[0].mxu0
  %v1011 = vadd.f32 %v792, %v1010
  %v1012 = vpop.f32.mrb[0].mxu0
  %1013 = vmatprep.mubr.f32.mxu0 0.0
  %1014 = vmatmul.mubr.f32.gmra.mrb[0].mxu0 %v770
  %v1015 = vpop.f32.mrb[0].mxu0
  %v1016 = vadd.f32 %v792, %v1015
  %v1017 = vpop.f32.mrb[0].mxu0
  %1018 = vdwg.mxu0
  %v1019 = vmul.f32 %v861, 0.2
  %v1020 = vmul.f32 %v866, 0.2
  %v1021 = vmul.f32 %v871, 0.2
  %v1022 = vmul.f32 %v876, 0.2
  %v1023 = vmul.f32 %v881, 0.2
  %v1024 = vmul.f32 %v886, 0.2
  %v1025 = vmul.f32 %v891, 0.2
  %v1026 = vmul.f32 %v896, 0.2
  %v1027 = vmul.f32 %v901, 0.2
  %v1028 = vmul.f32 %v906, 0.2
  %v1029 = vmul.f32 %v911, 0.2
  %v1030 = vmul.f32 %v916, 0.2
  %v1031 = vmul.f32 %v921, 0.2
  %v1032 = vmul.f32 %v926, 0.2
  %v1033 = vmul.f32 %v931, 0.2
  %v1034 = vmul.f32 %v936, 0.2
  %v1035 = vmul.f32 %v941, 0.2
  %v1036 = vmul.f32 %v946, 0.2
  %v1037 = vmul.f32 %v951, 0.2
  %v1038 = vmul.f32 %v956, 0.2
  %v1039 = vmul.f32 %v961, 0.2
  %v1040 = vmul.f32 %v966, 0.2
  %v1041 = vmul.f32 %v971, 0.2
  %v1042 = vmul.f32 %v976, 0.2
  %v1043 = vmul.f32 %v981, 0.2
  %v1044 = vmul.f32 %v986, 0.2
  %v1045 = vmul.f32 %v991, 0.2
  %v1046 = vmul.f32 %v996, 0.2
  %v1047 = vmul.f32 %v1001, 0.2
  %v1048 = vmul.f32 %v1006, 0.2
  %v1049 = vmul.f32 %v1011, 0.2
  %v1050 = vmul.f32 %v1016, 0.2
  %v1051 = vmax.f32 %v861, %v1019
  %v1052 = vmax.f32 %v866, %v1020
  %v1053 = vmax.f32 %v871, %v1021
  %v1054 = vmax.f32 %v876, %v1022
  %v1055 = vmax.f32 %v881, %v1023
  %v1056 = vmax.f32 %v886, %v1024
  %v1057 = vmax.f32 %v891, %v1025
  %v1058 = vmax.f32 %v896, %v1026
  %v1059 = vmax.f32 %v901, %v1027
  %v1060 = vmax.f32 %v906, %v1028
  %v1061 = vmax.f32 %v911, %v1029
  %v1062 = vmax.f32 %v916, %v1030
  %v1063 = vmax.f32 %v921, %v1031
  %v1064 = vmax.f32 %v926, %v1032
  %v1065 = vmax.f32 %v931, %v1033
  %v1066 = vmax.f32 %v936, %v1034
  %v1067 = vmax.f32 %v941, %v1035
  %v1068 = vmax.f32 %v946, %v1036
  %v1069 = vmax.f32 %v951, %v1037
  %v1070 = vmax.f32 %v956, %v1038
  %v1071 = vmax.f32 %v961, %v1039
  %v1072 = vmax.f32 %v966, %v1040
  %v1073 = vmax.f32 %v971, %v1041
  %v1074 = vmax.f32 %v976, %v1042
  %v1075 = vmax.f32 %v981, %v1043
  %v1076 = vmax.f32 %v986, %v1044
  %v1077 = vmax.f32 %v991, %v1045
  %v1078 = vmax.f32 %v996, %v1046
  %v1079 = vmax.f32 %v1001, %v1047
  %v1080 = vmax.f32 %v1006, %v1048
  %v1081 = vmax.f32 %v1011, %v1049
  %v1082 = vmax.f32 %v1016, %v1050
  %v1083 = vld [vmem:[%s7] sm:$0xff]
  %v1084 = vld [vmem:[%s7 + $0x8] sm:$0xff]
  %v1085 = vld [vmem:[%s7 + $0x10] sm:$0xff]
  %v1086 = vld [vmem:[%s7 + $0x18] sm:$0xff]
  %v1087 = vld [vmem:[%s7 + $0x20] sm:$0xff]
  %v1088 = vld [vmem:[%s7 + $0x28] sm:$0xff]
  %v1089 = vld [vmem:[%s7 + $0x30] sm:$0xff]
  %v1090 = vld [vmem:[%s7 + $0x38] sm:$0xff]
  %v1091 = vld [vmem:[%s7 + $0x40] sm:$0xff]
  %v1092 = vld [vmem:[%s7 + $0x48] sm:$0xff]
  %v1093 = vld [vmem:[%s7 + $0x50] sm:$0xff]
  %v1094 = vld [vmem:[%s7 + $0x58] sm:$0xff]
  %v1095 = vld [vmem:[%s7 + $0x60] sm:$0xff]
  %v1096 = vld [vmem:[%s7 + $0x68] sm:$0xff]
  %v1097 = vld [vmem:[%s7 + $0x70] sm:$0xff]
  %v1098 = vld [vmem:[%s7 + $0x78] sm:$0xff]
  %v1099 = vld [vmem:[%s8] sm:$0x1]
  %v1101 = vlaneseq
  %v1102 = vshrl.u32 %v1101, 7
  %v1103 = vsub.s32 0, %v1102
  %v1104 = vrot.slane %v1099, %v1103
  %1106 = vmatprep.subr.mxu0 0.0
  %1107 = vmatpush1.msra.mxu0 %v1083
  %1108 = vmatprep.subr.mxu0 0.0
  %1109 = vmatpush1.msra.mxu0 %v1084
  %1110 = vmatprep.subr.mxu0 0.0
  %1111 = vmatpush1.msra.mxu0 %v1085
  %1112 = vmatprep.subr.mxu0 0.0
  %1113 = vmatpush1.msra.mxu0 %v1086
  %1114 = vmatprep.subr.mxu0 0.0
  %1115 = vmatpush1.msra.mxu0 %v1087
  %1116 = vmatprep.subr.mxu0 0.0
  %1117 = vmatpush1.msra.mxu0 %v1088
  %1118 = vmatprep.subr.mxu0 0.0
  %1119 = vmatpush1.msra.mxu0 %v1089
  %1120 = vmatprep.subr.mxu0 0.0
  %1121 = vmatpush1.msra.mxu0 %v1090
  %1122 = vmatprep.subr.mxu0 0.0
  %1123 = vmatpush1.msra.mxu0 %v1091
  %1124 = vmatprep.subr.mxu0 0.0
  %1125 = vmatpush1.msra.mxu0 %v1092
  %1126 = vmatprep.subr.mxu0 0.0
  %1127 = vmatpush1.msra.mxu0 %v1093
  %1128 = vmatprep.subr.mxu0 0.0
  %1129 = vmatpush1.msra.mxu0 %v1094
  %1130 = vmatprep.subr.mxu0 0.0
  %1131 = vmatpush1.msra.mxu0 %v1095
  %1132 = vmatprep.subr.mxu0 0.0
  %1133 = vmatpush1.msra.mxu0 %v1096
  %1134 = vmatprep.subr.mxu0 0.0
  %1135 = vmatpush1.msra.mxu0 %v1097
  %1136 = vmatprep.subr.mxu0 0.0
  %1137 = vmatpush1.msra.mxu0 %v1098
  %1138 = vmatprep.subr.mxu0 0.0
  %1139 = vmatpush1.msra.mxu0 0.0
  %1140 = vmatprep.subr.mxu0 0.0
  %1141 = vmatpush1.msra.mxu0 0.0
  %1142 = vmatprep.subr.mxu0 0.0
  %1143 = vmatpush1.msra.mxu0 0.0
  %1144 = vmatprep.subr.mxu0 0.0
  %1145 = vmatpush1.msra.mxu0 0.0
  %1146 = vmatprep.subr.mxu0 0.0
  %1147 = vmatpush1.msra.mxu0 0.0
  %1148 = vmatprep.subr.mxu0 0.0
  %1149 = vmatpush1.msra.mxu0 0.0
  %1150 = vmatprep.subr.mxu0 0.0
  %1151 = vmatpush1.msra.mxu0 0.0
  %1152 = vmatprep.subr.mxu0 0.0
  %1153 = vmatpush1.msra.mxu0 0.0
  %1154 = vmatprep.subr.mxu0 0.0
  %1155 = vmatpush1.msra.mxu0 0.0
  %1156 = vmatprep.subr.mxu0 0.0
  %1157 = vmatpush1.msra.mxu0 0.0
  %1158 = vmatprep.subr.mxu0 0.0
  %1159 = vmatpush1.msra.mxu0 0.0
  %1160 = vmatprep.subr.mxu0 0.0
  %1161 = vmatpush1.msra.mxu0 0.0
  %1162 = vmatprep.subr.mxu0 0.0
  %1163 = vmatpush1.msra.mxu0 0.0
  %1164 = vmatprep.subr.mxu0 0.0
  %1165 = vmatpush1.msra.mxu0 0.0
  %1166 = vmatprep.subr.mxu0 0.0
  %1167 = vmatpush1.msra.mxu0 0.0
  %1168 = vmatprep.subr.mxu0 0.0
  %1169 = vmatpush1.msra.mxu0 0.0
  %1170 = vmatprep.mubr.f32.mxu0 0.0
  %1171 = vmatmul.mubr.f32.gmra.mrb[0].mxu0 %v1051
  %v1172 = vpop.f32.mrb[0].mxu0
  %v1173 = vadd.f32 %v1104, %v1172
  %v1174 = vpop.f32.mrb[0].mxu0
  %1175 = vmatprep.mubr.f32.mxu0 0.0
  %1176 = vmatmul.mubr.f32.gmra.mrb[0].mxu0 %v1052
  %v1177 = vpop.f32.mrb[0].mxu0
  %v1178 = vadd.f32 %v1104, %v1177
  %v1179 = vpop.f32.mrb[0].mxu0
  %1180 = vmatprep.mubr.f32.mxu0 0.0
  %1181 = vmatmul.mubr.f32.gmra.mrb[0].mxu0 %v1053
  %v1182 = vpop.f32.mrb[0].mxu0
  %v1183 = vadd.f32 %v1104, %v1182
  %v1184 = vpop.f32.mrb[0].mxu0
  %1185 = vmatprep.mubr.f32.mxu0 0.0
  %1186 = vmatmul.mubr.f32.gmra.mrb[0].mxu0 %v1054
  %v1187 = vpop.f32.mrb[0].mxu0
  %v1188 = vadd.f32 %v1104, %v1187
  %v1189 = vpop.f32.mrb[0].mxu0
  %1190 = vmatprep.mubr.f32.mxu0 0.0
  %1191 = vmatmul.mubr.f32.gmra.mrb[0].mxu0 %v1055
  %v1192 = vpop.f32.mrb[0].mxu0
  %v1193 = vadd.f32 %v1104, %v1192
  %v1194 = vpop.f32.mrb[0].mxu0
  %1195 = vmatprep.mubr.f32.mxu0 0.0
  %1196 = vmatmul.mubr.f32.gmra.mrb[0].mxu0 %v1056
  %v1197 = vpop.f32.mrb[0].mxu0
  %v1198 = vadd.f32 %v1104, %v1197
  %v1199 = vpop.f32.mrb[0].mxu0
  %1200 = vmatprep.mubr.f32.mxu0 0.0
  %1201 = vmatmul.mubr.f32.gmra.mrb[0].mxu0 %v1057
  %v1202 = vpop.f32.mrb[0].mxu0
  %v1203 = vadd.f32 %v1104, %v1202
  %v1204 = vpop.f32.mrb[0].mxu0
  %1205 = vmatprep.mubr.f32.mxu0 0.0
  %1206 = vmatmul.mubr.f32.gmra.mrb[0].mxu0 %v1058
  %v1207 = vpop.f32.mrb[0].mxu0
  %v1208 = vadd.f32 %v1104, %v1207
  %v1209 = vpop.f32.mrb[0].mxu0
  %1210 = vmatprep.mubr.f32.mxu0 0.0
  %1211 = vmatmul.mubr.f32.gmra.mrb[0].mxu0 %v1059
  %v1212 = vpop.f32.mrb[0].mxu0
  %v1213 = vadd.f32 %v1104, %v1212
  %v1214 = vpop.f32.mrb[0].mxu0
  %1215 = vmatprep.mubr.f32.mxu0 0.0
  %1216 = vmatmul.mubr.f32.gmra.mrb[0].mxu0 %v1060
  %v1217 = vpop.f32.mrb[0].mxu0
  %v1218 = vadd.f32 %v1104, %v1217
  %v1219 = vpop.f32.mrb[0].mxu0
  %1220 = vmatprep.mubr.f32.mxu0 0.0
  %1221 = vmatmul.mubr.f32.gmra.mrb[0].mxu0 %v1061
  %v1222 = vpop.f32.mrb[0].mxu0
  %v1223 = vadd.f32 %v1104, %v1222
  %v1224 = vpop.f32.mrb[0].mxu0
  %1225 = vmatprep.mubr.f32.mxu0 0.0
  %1226 = vmatmul.mubr.f32.gmra.mrb[0].mxu0 %v1062
  %v1227 = vpop.f32.mrb[0].mxu0
  %v1228 = vadd.f32 %v1104, %v1227
  %v1229 = vpop.f32.mrb[0].mxu0
  %1230 = vmatprep.mubr.f32.mxu0 0.0
  %1231 = vmatmul.mubr.f32.gmra.mrb[0].mxu0 %v1063
  %v1232 = vpop.f32.mrb[0].mxu0
  %v1233 = vadd.f32 %v1104, %v1232
  %v1234 = vpop.f32.mrb[0].mxu0
  %1235 = vmatprep.mubr.f32.mxu0 0.0
  %1236 = vmatmul.mubr.f32.gmra.mrb[0].mxu0 %v1064
  %v1237 = vpop.f32.mrb[0].mxu0
  %v1238 = vadd.f32 %v1104, %v1237
  %v1239 = vpop.f32.mrb[0].mxu0
  %1240 = vmatprep.mubr.f32.mxu0 0.0
  %1241 = vmatmul.mubr.f32.gmra.mrb[0].mxu0 %v1065
  %v1242 = vpop.f32.mrb[0].mxu0
  %v1243 = vadd.f32 %v1104, %v1242
  %v1244 = vpop.f32.mrb[0].mxu0
  %1245 = vmatprep.mubr.f32.mxu0 0.0
  %1246 = vmatmul.mubr.f32.gmra.mrb[0].mxu0 %v1066
  %v1247 = vpop.f32.mrb[0].mxu0
  %v1248 = vadd.f32 %v1104, %v1247
  %v1249 = vpop.f32.mrb[0].mxu0
  %1250 = vmatprep.mubr.f32.mxu0 0.0
  %1251 = vmatmul.mubr.f32.gmra.mrb[0].mxu0 %v1067
  %v1252 = vpop.f32.mrb[0].mxu0
  %v1253 = vadd.f32 %v1104, %v1252
  %v1254 = vpop.f32.mrb[0].mxu0
  %1255 = vmatprep.mubr.f32.mxu0 0.0
  %1256 = vmatmul.mubr.f32.gmra.mrb[0].mxu0 %v1068
  %v1257 = vpop.f32.mrb[0].mxu0
  %v1258 = vadd.f32 %v1104, %v1257
  %v1259 = vpop.f32.mrb[0].mxu0
  %1260 = vmatprep.mubr.f32.mxu0 0.0
  %1261 = vmatmul.mubr.f32.gmra.mrb[0].mxu0 %v1069
  %v1262 = vpop.f32.mrb[0].mxu0
  %v1263 = vadd.f32 %v1104, %v1262
  %v1264 = vpop.f32.mrb[0].mxu0
  %1265 = vmatprep.mubr.f32.mxu0 0.0
  %1266 = vmatmul.mubr.f32.gmra.mrb[0].mxu0 %v1070
  %v1267 = vpop.f32.mrb[0].mxu0
  %v1268 = vadd.f32 %v1104, %v1267
  %v1269 = vpop.f32.mrb[0].mxu0
  %1270 = vmatprep.mubr.f32.mxu0 0.0
  %1271 = vmatmul.mubr.f32.gmra.mrb[0].mxu0 %v1071
  %v1272 = vpop.f32.mrb[0].mxu0
  %v1273 = vadd.f32 %v1104, %v1272
  %v1274 = vpop.f32.mrb[0].mxu0
  %1275 = vmatprep.mubr.f32.mxu0 0.0
  %1276 = vmatmul.mubr.f32.gmra.mrb[0].mxu0 %v1072
  %v1277 = vpop.f32.mrb[0].mxu0
  %v1278 = vadd.f32 %v1104, %v1277
  %v1279 = vpop.f32.mrb[0].mxu0
  %1280 = vmatprep.mubr.f32.mxu0 0.0
  %1281 = vmatmul.mubr.f32.gmra.mrb[0].mxu0 %v1073
  %v1282 = vpop.f32.mrb[0].mxu0
  %v1283 = vadd.f32 %v1104, %v1282
  %v1284 = vpop.f32.mrb[0].mxu0
  %1285 = vmatprep.mubr.f32.mxu0 0.0
  %1286 = vmatmul.mubr.f32.gmra.mrb[0].mxu0 %v1074
  %v1287 = vpop.f32.mrb[0].mxu0
  %v1288 = vadd.f32 %v1104, %v1287
  %v1289 = vpop.f32.mrb[0].mxu0
  %1290 = vmatprep.mubr.f32.mxu0 0.0
  %1291 = vmatmul.mubr.f32.gmra.mrb[0].mxu0 %v1075
  %v1292 = vpop.f32.mrb[0].mxu0
  %v1293 = vadd.f32 %v1104, %v1292
  %v1294 = vpop.f32.mrb[0].mxu0
  %1295 = vmatprep.mubr.f32.mxu0 0.0
  %1296 = vmatmul.mubr.f32.gmra.mrb[0].mxu0 %v1076
  %v1297 = vpop.f32.mrb[0].mxu0
  %v1298 = vadd.f32 %v1104, %v1297
  %v1299 = vpop.f32.mrb[0].mxu0
  %1300 = vmatprep.mubr.f32.mxu0 0.0
  %1301 = vmatmul.mubr.f32.gmra.mrb[0].mxu0 %v1077
  %v1302 = vpop.f32.mrb[0].mxu0
  %v1303 = vadd.f32 %v1104, %v1302
  %v1304 = vpop.f32.mrb[0].mxu0
  %1305 = vmatprep.mubr.f32.mxu0 0.0
  %1306 = vmatmul.mubr.f32.gmra.mrb[0].mxu0 %v1078
  %v1307 = vpop.f32.mrb[0].mxu0
  %v1308 = vadd.f32 %v1104, %v1307
  %v1309 = vpop.f32.mrb[0].mxu0
  %1310 = vmatprep.mubr.f32.mxu0 0.0
  %1311 = vmatmul.mubr.f32.gmra.mrb[0].mxu0 %v1079
  %v1312 = vpop.f32.mrb[0].mxu0
  %v1313 = vadd.f32 %v1104, %v1312
  %v1314 = vpop.f32.mrb[0].mxu0
  %1315 = vmatprep.mubr.f32.mxu0 0.0
  %1316 = vmatmul.mubr.f32.gmra.mrb[0].mxu0 %v1080
  %v1317 = vpop.f32.mrb[0].mxu0
  %v1318 = vadd.f32 %v1104, %v1317
  %v1319 = vpop.f32.mrb[0].mxu0
  %1320 = vmatprep.mubr.f32.mxu0 0.0
  %1321 = vmatmul.mubr.f32.gmra.mrb[0].mxu0 %v1081
  %v1322 = vpop.f32.mrb[0].mxu0
  %v1323 = vadd.f32 %v1104, %v1322
  %v1324 = vpop.f32.mrb[0].mxu0
  %1325 = vmatprep.mubr.f32.mxu0 0.0
  %1326 = vmatmul.mubr.f32.gmra.mrb[0].mxu0 %v1082
  %v1327 = vpop.f32.mrb[0].mxu0
  %v1328 = vadd.f32 %v1104, %v1327
  %v1329 = vpop.f32.mrb[0].mxu0
  %1330 = vdwg.mxu0
  %vm1331 = vcmask 15360
  %1332 = vst.msk [vmem:[%s9] sm:$0xff] %vm1331, %v1173
  %1333 = vst.msk [vmem:[%s9 + $0x8] sm:$0xff] %vm1331, %v1178
  %1334 = vst.msk [vmem:[%s9 + $0x10] sm:$0xff] %vm1331, %v1183
  %1335 = vst.msk [vmem:[%s9 + $0x18] sm:$0xff] %vm1331, %v1188
  %1336 = vst.msk [vmem:[%s9 + $0x20] sm:$0xff] %vm1331, %v1193
  %1337 = vst.msk [vmem:[%s9 + $0x28] sm:$0xff] %vm1331, %v1198
  %1338 = vst.msk [vmem:[%s9 + $0x30] sm:$0xff] %vm1331, %v1203
  %1339 = vst.msk [vmem:[%s9 + $0x38] sm:$0xff] %vm1331, %v1208
  %1340 = vst.msk [vmem:[%s9 + $0x40] sm:$0xff] %vm1331, %v1213
  %1341 = vst.msk [vmem:[%s9 + $0x48] sm:$0xff] %vm1331, %v1218
  %1342 = vst.msk [vmem:[%s9 + $0x50] sm:$0xff] %vm1331, %v1223
  %1343 = vst.msk [vmem:[%s9 + $0x58] sm:$0xff] %vm1331, %v1228
  %1344 = vst.msk [vmem:[%s9 + $0x60] sm:$0xff] %vm1331, %v1233
  %1345 = vst.msk [vmem:[%s9 + $0x68] sm:$0xff] %vm1331, %v1238
  %1346 = vst.msk [vmem:[%s9 + $0x70] sm:$0xff] %vm1331, %v1243
  %1347 = vst.msk [vmem:[%s9 + $0x78] sm:$0xff] %vm1331, %v1248
  %1348 = vst.msk [vmem:[%s9 + $0x80] sm:$0xff] %vm1331, %v1253
  %1349 = vst.msk [vmem:[%s9 + $0x88] sm:$0xff] %vm1331, %v1258
  %1350 = vst.msk [vmem:[%s9 + $0x90] sm:$0xff] %vm1331, %v1263
  %1351 = vst.msk [vmem:[%s9 + $0x98] sm:$0xff] %vm1331, %v1268
  %1352 = vst.msk [vmem:[%s9 + $0xa0] sm:$0xff] %vm1331, %v1273
  %1353 = vst.msk [vmem:[%s9 + $0xa8] sm:$0xff] %vm1331, %v1278
  %1354 = vst.msk [vmem:[%s9 + $0xb0] sm:$0xff] %vm1331, %v1283
  %1355 = vst.msk [vmem:[%s9 + $0xb8] sm:$0xff] %vm1331, %v1288
  %1356 = vst.msk [vmem:[%s9 + $0xc0] sm:$0xff] %vm1331, %v1293
  %1357 = vst.msk [vmem:[%s9 + $0xc8] sm:$0xff] %vm1331, %v1298
  %1358 = vst.msk [vmem:[%s9 + $0xd0] sm:$0xff] %vm1331, %v1303
  %1359 = vst.msk [vmem:[%s9 + $0xd8] sm:$0xff] %vm1331, %v1308
  %1360 = vst.msk [vmem:[%s9 + $0xe0] sm:$0xff] %vm1331, %v1313
  %1361 = vst.msk [vmem:[%s9 + $0xe8] sm:$0xff] %vm1331, %v1318
  %1362 = vst.msk [vmem:[%s9 + $0xf0] sm:$0xff] %vm1331, %v1323
  %1363 = vst.msk [vmem:[%s9 + $0xf8] sm:$0xff] %vm1331, %v1328
  // Predicated region
  $region38: #{tpu_custom_call.1} parent=0 // pred_check
    _
  $region39: #{tpu_custom_call.1} parent=0 // pred_check_branch
    %1365 = sbr.rel (0) target = $region41
  $region40: #{tpu_custom_call.1} parent=0 // pred_region
    _
  $region41: #{tpu_custom_call.1} parent=0 // pred_fallthru
    _
  // Predicated region
  $region42: #{tpu_custom_call.1} parent=0 // pred_check
    _
  $region43: #{tpu_custom_call.1} parent=0 // pred_check_branch
    %1367 = sbr.rel (0) target = $region45
  $region44: #{tpu_custom_call.1} parent=0 // pred_region
    _
  $region45: #{tpu_custom_call.1} parent=0 // pred_fallthru
    _

</llo_original>
